<compile_context>
chip_gen: v7x
topology: tpu7x:2x2x1
jax: 0.10.0
libtpu: 0.0.40
codegen_flags: <defaults>
</compile_context>

<pallas_src>
import math
import functools

import jax
import jax.numpy as jnp
from jax.experimental import pallas as pl
from jax.experimental.pallas import tpu as pltpu


# ----------------------------- configuration --------------------------------
INPUT_DIM = 32
OUTPUT_DIM = 32
GRID_MIN = -2.0
GRID_MAX = 2.0
NUM_GRIDS = 8
K1 = 1
K2 = 5
LN_EPS = 1e-5

_H = (GRID_MAX - GRID_MIN) / NUM_GRIDS                 # 0.5
_GAMMA = K1 / NUM_GRIDS                                # 0.125
_EXTRA = math.ceil(K2 * _GAMMA / _H)                   # 2
NUM_BASIS = NUM_GRIDS + 2 * _EXTRA + 1                 # 13
# grid is a uniform linspace with spacing _H (non-trainable buffer).
_GRID_VALS = [GRID_MIN - _H * _EXTRA + _H * g for g in range(NUM_BASIS)]
# gamma is folded into LayerNorm affine + grid on the host, so in the kernel
# the Lorentzian is simply 1 / (d^2 + 1) with d already in gamma units.
_GRID_SCALED = [float(v / _GAMMA) for v in _GRID_VALS]

_LANES = 128
assert _LANES % INPUT_DIM == 0 and INPUT_DIM == OUTPUT_DIM, (
    "this kernel is specialised to input_dim == output_dim dividing 128")
_PACK = _LANES // INPUT_DIM                            # 4 tokens per packed row
_WIDE = NUM_BASIS * _LANES                             # 1664 fused basis columns


def _round_up(n, m):
    return ((n + m - 1) // m) * m


# ------------------------------- kernel --------------------------------------
def _lorentzian_kan_kernel(xp_ref, lnw_ref, lnb_ref, mean_ref,
                           bw_ref, bb_ref, sw_ref, o_ref):
    x = xp_ref[...].astype(jnp.float32)                      # (tm, 128) = 4 tokens/row

    # ---- base branch: block-diagonal Linear(SiLU(x)), bf16 MXU operands -----
    silu = x * jax.nn.sigmoid(x)
    acc = jnp.dot(silu.astype(jnp.bfloat16), bw_ref[...],
                  preferred_element_type=jnp.float32) + bb_ref[...]     # (tm, 128)

    # ---- LayerNorm within each 32-lane token group ---------------------------
    # Dependency-free stats: mean = E[x], var = E[x^2] - mean^2 via two
    # block-diagonal ones/32 averaging matmuls that issue back-to-back.
    mean = jnp.dot(x, mean_ref[...], preferred_element_type=jnp.float32)
    ex2 = jnp.dot(x * x, mean_ref[...], preferred_element_type=jnp.float32)
    var = jnp.maximum(ex2 - mean * mean, 0.0)
    # lnw/lnb are pre-scaled by 1/gamma on the host, so ln == LayerNorm(x)/gamma.
    ln = (x - mean) * jax.lax.rsqrt(var + LN_EPS) * lnw_ref[...] + lnb_ref[...]

    # ---- Lorentzian basis, built block-by-block with baked-in grid constants.
    # basis_g = 1 / ((ln - g/gamma)^2 + 1) ; cast to bf16 at the MXU boundary.
    blocks = []
    for g in range(NUM_BASIS):
        d = ln - _GRID_SCALED[g]
        blocks.append(pl.reciprocal(d * d + 1.0, approx=True).astype(jnp.bfloat16))
    basis = jnp.concatenate(blocks, axis=-1)                 # (tm, 1664) bf16

    # one fused (tm, 1664) @ (1664, 128) spline matmul, f32 accumulation
    acc = acc + jnp.dot(basis, sw_ref[...], preferred_element_type=jnp.float32)

    o_ref[...] = acc.astype(o_ref.dtype)


# ------------------------------- wrapper --------------------------------------
@functools.partial(jax.jit, static_argnames=("tm_tokens",))
def lorentzian_kan_forward(x, ln_w, ln_b, base_w, base_b, spline_w_oig,
                           *, tm_tokens=4096):
    """Forward pass of LorentzianKANLayer.

    x:            (..., INPUT_DIM)
    ln_w, ln_b:   (INPUT_DIM,)              LayerNorm affine params
    base_w:       (INPUT_DIM, OUTPUT_DIM)   = torch base_linear.weight.T
    base_b:       (OUTPUT_DIM,)
    spline_w_oig: (OUTPUT_DIM, INPUT_DIM, NUM_BASIS)   torch layout

    tm_tokens: row-tile size in tokens (4 tokens / 128-lane row).  4096 is a
    good default; v5e/v6e (128 MiB VMEM) can go to 8192, v7x should stay
    <= 4096.
    """
    lead = x.shape[:-1]
    x2 = x.reshape(-1, INPUT_DIM)
    n_tok = x2.shape[0]

    # ---- host-side parameter packing (block-diagonal, 4 tokens / 128 lanes)
    f32 = jnp.float32
    bf16 = jnp.bfloat16
    eye_p = jnp.eye(_PACK, dtype=f32)
    bw_bd = jnp.einsum("pq,io->piqo", eye_p,
                       base_w.astype(f32)).reshape(_LANES, _LANES).astype(bf16)
    mean_mat = jnp.einsum(
        "pq,io->piqo", eye_p,
        jnp.full((INPUT_DIM, INPUT_DIM), 1.0 / INPUT_DIM, f32)
    ).reshape(_LANES, _LANES)
    w_gio = jnp.transpose(spline_w_oig.astype(f32), (2, 1, 0))           # (G, I, O)
    sw_bd = jnp.einsum("pq,gio->gpiqo", eye_p,
                       w_gio).reshape(_WIDE, _LANES).astype(bf16)
    inv_gamma = 1.0 / _GAMMA
    lnw_t = jnp.tile((ln_w.astype(f32) * inv_gamma).reshape(1, INPUT_DIM),
                     (1, _PACK))
    lnb_t = jnp.tile((ln_b.astype(f32) * inv_gamma).reshape(1, INPUT_DIM),
                     (1, _PACK))
    bb_t = jnp.tile(base_b.astype(f32).reshape(1, OUTPUT_DIM), (1, _PACK))

    # ---- token padding & 4-token lane packing --------------------------------
    n_rows = pl.cdiv(n_tok, _PACK)
    tm_rows_req = _round_up(max(tm_tokens // _PACK, 8), 8)
    # Cap the tile at ceil(n_rows/2) so there are >= 2 grid steps whenever
    # possible; the "parallel" axis then shards across v7x's two TensorCores.
    tm_rows = max(8, min(tm_rows_req, _round_up(pl.cdiv(n_rows, 2), 8)))
    n_rows_p = _round_up(n_rows, tm_rows)
    n_tok_p = n_rows_p * _PACK
    if n_tok_p != n_tok:
        x2 = jnp.pad(x2, ((0, n_tok_p - n_tok), (0, 0)))
    xp = x2.reshape(n_rows_p, _LANES)

    grid = (n_rows_p // tm_rows,)
    cost = pl.CostEstimate(
        flops=2 * n_rows_p * _LANES * (3 * _LANES + _WIDE),
        transcendentals=n_rows_p * (2 * _LANES + _WIDE),
        bytes_accessed=(4 * 2 * n_rows_p * _LANES                 # x + out (f32)
                        + 2 * (sw_bd.size + bw_bd.size)            # bf16 weights
                        + 4 * (mean_mat.size + 4 * _LANES)),
    )

    out_p = pl.pallas_call(
        _lorentzian_kan_kernel,
        out_shape=jax.ShapeDtypeStruct((n_rows_p, _LANES), x.dtype),
        grid_spec=pltpu.PrefetchScalarGridSpec(
            num_scalar_prefetch=0,
            grid=grid,
            in_specs=[
                pl.BlockSpec((tm_rows, _LANES), lambda i: (i, 0)),   # x packed
                pl.BlockSpec((1, _LANES), lambda i: (0, 0)),         # ln weight/gamma
                pl.BlockSpec((1, _LANES), lambda i: (0, 0)),         # ln bias/gamma
                pl.BlockSpec((_LANES, _LANES), lambda i: (0, 0)),    # mean matrix (f32)
                pl.BlockSpec((_LANES, _LANES), lambda i: (0, 0)),    # base W (bd, bf16)
                pl.BlockSpec((1, _LANES), lambda i: (0, 0)),         # base bias
                pl.BlockSpec((_WIDE, _LANES), lambda i: (0, 0)),     # spline W (bd, bf16)
            ],
            out_specs=pl.BlockSpec((tm_rows, _LANES), lambda i: (i, 0)),
        ),
        compiler_params=pltpu.CompilerParams(
            dimension_semantics=("parallel",),
            vmem_limit_bytes=48 << 20),
        cost_estimate=cost,
    )(xp, lnw_t, lnb_t, mean_mat, bw_bd, bb_t, sw_bd)

    out = out_p.reshape(n_tok_p, OUTPUT_DIM)[:n_tok]
    return out.reshape(*lead, OUTPUT_DIM)


# --------------------------- reference (pure JAX) -----------------------------
def _reference(x, ln_w, ln_b, base_w, base_b, spline_w_oig):
    xf = x.astype(jnp.float32)
    mean = jnp.mean(xf, axis=-1, keepdims=True)
    var = jnp.mean((xf - mean) ** 2, axis=-1, keepdims=True)
    ln = (xf - mean) / jnp.sqrt(var + LN_EPS) * ln_w + ln_b
    grid_v = jnp.asarray(_GRID_VALS, jnp.float32)
    gamma2 = _GAMMA * _GAMMA
    basis = gamma2 / ((ln[..., None] - grid_v) ** 2 + gamma2)        # (..., I, G)
    spline = jnp.einsum("...ig,oig->...o", basis, spline_w_oig)
    base = (xf * jax.nn.sigmoid(xf)) @ base_w + base_b
    return base + spline


# ---------------------------------- main --------------------------------------
if __name__ == "__main__":
    key = jax.random.PRNGKey(0)
    k_x, k_bw, k_bb, k_sw = jax.random.split(key, 4)

    B, S = 2, 8                                    # leading dims -> 16 tokens
    x = jax.random.normal(k_x, (B, S, INPUT_DIM), jnp.float32)

    # LayerNorm params (PyTorch default init: weight=1, bias=0)
    ln_w = jnp.ones((INPUT_DIM,), jnp.float32)
    ln_b = jnp.zeros((INPUT_DIM,), jnp.float32)

    # base_linear: nn.Linear(I, O); store W as (I, O) = W_torch.T
    bound = 1.0 / math.sqrt(INPUT_DIM)
    base_w = jax.random.uniform(k_bw, (INPUT_DIM, OUTPUT_DIM), jnp.float32,
                                minval=-bound, maxval=bound)
    base_b = jax.random.uniform(k_bb, (OUTPUT_DIM,), jnp.float32,
                                minval=-bound, maxval=bound)

    # spline_weight: torch shape (O, I, G), kaiming_uniform fan_in = I * G.
    gain = math.sqrt(2.0)
    sw_bound = gain * math.sqrt(3.0 / (INPUT_DIM * NUM_BASIS))
    spline_w = jax.random.uniform(
        k_sw, (OUTPUT_DIM, INPUT_DIM, NUM_BASIS), jnp.float32,
        minval=-sw_bound, maxval=sw_bound)

    out = lorentzian_kan_forward(x, ln_w, ln_b, base_w, base_b, spline_w)
    out = jax.block_until_ready(out)

    ref = _reference(x, ln_w, ln_b, base_w, base_b, spline_w)
    assert out.shape == (B, S, OUTPUT_DIM)
    err = float(jnp.max(jnp.abs(out - ref)))
    # Tolerance relaxed vs the f32 reference: the MXU operands are bf16 and the
    # Lorentzian uses the EUP approximate reciprocal.  Observed error is a few
    # 1e-3; outputs are O(0.1-1).
    assert err < 2e-2, err

    print("KERNEL_OK")
</pallas_src>

<mosaic_0001>
module attributes {stable_mosaic.version = 11 : i64} {
  func.func @_lorentzian_kan_kernel(%arg0: i32, %arg1: memref<8x128xf32, #tpu.memory_space<vmem>>, %arg2: memref<1x128xf32, #tpu.memory_space<vmem>>, %arg3: memref<1x128xf32, #tpu.memory_space<vmem>>, %arg4: memref<128x128xf32, #tpu.memory_space<vmem>>, %arg5: memref<128x128xbf16, #tpu.memory_space<vmem>>, %arg6: memref<1x128xf32, #tpu.memory_space<vmem>>, %arg7: memref<1664x128xbf16, #tpu.memory_space<vmem>>, %arg8: memref<8x128xf32, #tpu.memory_space<vmem>>) attributes {dimension_semantics = [#tpu.dimension_semantics<parallel>], iteration_bounds = array<i64: 1>, scalar_prefetch = 0 : i64, scratch_operands = 0 : i64, tpu.core_type = #tpu.core_type<tc>, window_params = [{transform_indices = @transform_0, window_bounds = array<i64: 8, 128>}, {pipeline_mode = #tpu.pipeline_mode<synchronous>, transform_indices = @transform_1, window_bounds = array<i64: 1, 128>}, {pipeline_mode = #tpu.pipeline_mode<synchronous>, transform_indices = @transform_2, window_bounds = array<i64: 1, 128>}, {pipeline_mode = #tpu.pipeline_mode<synchronous>, transform_indices = @transform_3, window_bounds = array<i64: 128, 128>}, {pipeline_mode = #tpu.pipeline_mode<synchronous>, transform_indices = @transform_4, window_bounds = array<i64: 128, 128>}, {pipeline_mode = #tpu.pipeline_mode<synchronous>, transform_indices = @transform_5, window_bounds = array<i64: 1, 128>}, {pipeline_mode = #tpu.pipeline_mode<synchronous>, transform_indices = @transform_6, window_bounds = array<i64: 1664, 128>}, {transform_indices = @transform_7, window_bounds = array<i64: 8, 128>}]} {
    %c0 = arith.constant 0 : index
    %c0_0 = arith.constant 0 : index
    %0 = vector.load %arg1[%c0, %c0_0] : memref<8x128xf32, #tpu.memory_space<vmem>>, vector<8x128xf32>
    %1 = arith.negf %0 : vector<8x128xf32>
    %2 = math.exp %1 : vector<8x128xf32>
    %cst = arith.constant 1.000000e+00 : f32
    %3 = vector.broadcast %cst : f32 to vector<8x128xf32>
    %4 = arith.addf %3, %2 : vector<8x128xf32>
    %5 = arith.divf %3, %4 : vector<8x128xf32>
    %6 = arith.mulf %0, %5 : vector<8x128xf32>
    %7 = arith.truncf %6 : vector<8x128xf32> to vector<8x128xbf16>
    %c0_1 = arith.constant 0 : index
    %c0_2 = arith.constant 0 : index
    %8 = vector.load %arg5[%c0_1, %c0_2] : memref<128x128xbf16, #tpu.memory_space<vmem>>, vector<128x128xbf16>
    %cst_3 = arith.constant dense<0.000000e+00> : vector<8x128xf32>
    %9 = tpu.matmul %7, %8, %cst_3 {dimension_numbers = #tpu.dot_dimension_numbers<[1], [0], [0], [1], [0, 0, 1, 1], [], []>} : vector<8x128xbf16>, vector<128x128xbf16>, vector<8x128xf32> -> vector<8x128xf32>
    %c0_4 = arith.constant 0 : index
    %c0_5 = arith.constant 0 : index
    %10 = vector.load %arg6[%c0_4, %c0_5] : memref<1x128xf32, #tpu.memory_space<vmem>>, vector<1x128xf32>
    %11 = vector.broadcast %10 : vector<1x128xf32> to vector<8x128xf32>
    %12 = arith.addf %9, %11 : vector<8x128xf32>
    %c0_6 = arith.constant 0 : index
    %c0_7 = arith.constant 0 : index
    %13 = vector.load %arg4[%c0_6, %c0_7] : memref<128x128xf32, #tpu.memory_space<vmem>>, vector<128x128xf32>
    %cst_8 = arith.constant dense<0.000000e+00> : vector<8x128xf32>
    %14 = tpu.matmul %0, %13, %cst_8 {dimension_numbers = #tpu.dot_dimension_numbers<[1], [0], [0], [1], [0, 0, 1, 1], [], []>} : vector<8x128xf32>, vector<128x128xf32>, vector<8x128xf32> -> vector<8x128xf32>
    %15 = arith.mulf %0, %0 : vector<8x128xf32>
    %c0_9 = arith.constant 0 : index
    %c0_10 = arith.constant 0 : index
    %16 = vector.load %arg4[%c0_9, %c0_10] : memref<128x128xf32, #tpu.memory_space<vmem>>, vector<128x128xf32>
    %cst_11 = arith.constant dense<0.000000e+00> : vector<8x128xf32>
    %17 = tpu.matmul %15, %16, %cst_11 {dimension_numbers = #tpu.dot_dimension_numbers<[1], [0], [0], [1], [0, 0, 1, 1], [], []>} : vector<8x128xf32>, vector<128x128xf32>, vector<8x128xf32> -> vector<8x128xf32>
    %18 = arith.mulf %14, %14 : vector<8x128xf32>
    %19 = arith.subf %17, %18 : vector<8x128xf32>
    %cst_12 = arith.constant 0.000000e+00 : f32
    %20 = vector.broadcast %cst_12 : f32 to vector<8x128xf32>
    %21 = arith.maximumf %19, %20 : vector<8x128xf32>
    %22 = arith.subf %0, %14 : vector<8x128xf32>
    %cst_13 = arith.constant 9.99999974E-6 : f32
    %23 = vector.broadcast %cst_13 : f32 to vector<8x128xf32>
    %24 = arith.addf %21, %23 : vector<8x128xf32>
    %25 = math.rsqrt %24 : vector<8x128xf32>
    %26 = arith.mulf %22, %25 : vector<8x128xf32>
    %c0_14 = arith.constant 0 : index
    %c0_15 = arith.constant 0 : index
    %27 = vector.load %arg2[%c0_14, %c0_15] : memref<1x128xf32, #tpu.memory_space<vmem>>, vector<1x128xf32>
    %28 = vector.broadcast %27 : vector<1x128xf32> to vector<8x128xf32>
    %29 = arith.mulf %26, %28 : vector<8x128xf32>
    %c0_16 = arith.constant 0 : index
    %c0_17 = arith.constant 0 : index
    %30 = vector.load %arg3[%c0_16, %c0_17] : memref<1x128xf32, #tpu.memory_space<vmem>>, vector<1x128xf32>
    %31 = vector.broadcast %30 : vector<1x128xf32> to vector<8x128xf32>
    %32 = arith.addf %29, %31 : vector<8x128xf32>
    %cst_18 = arith.constant -2.400000e+01 : f32
    %33 = vector.broadcast %cst_18 : f32 to vector<8x128xf32>
    %34 = arith.subf %32, %33 : vector<8x128xf32>
    %35 = arith.mulf %34, %34 : vector<8x128xf32>
    %cst_19 = arith.constant 1.000000e+00 : f32
    %36 = vector.broadcast %cst_19 : f32 to vector<8x128xf32>
    %37 = arith.addf %35, %36 : vector<8x128xf32>
    %38 = tpu.reciprocal %37 {approx = true} : vector<8x128xf32> -> vector<8x128xf32>
    %39 = arith.truncf %38 : vector<8x128xf32> to vector<8x128xbf16>
    %cst_20 = arith.constant -2.000000e+01 : f32
    %40 = vector.broadcast %cst_20 : f32 to vector<8x128xf32>
    %41 = arith.subf %32, %40 : vector<8x128xf32>
    %42 = arith.mulf %41, %41 : vector<8x128xf32>
    %cst_21 = arith.constant 1.000000e+00 : f32
    %43 = vector.broadcast %cst_21 : f32 to vector<8x128xf32>
    %44 = arith.addf %42, %43 : vector<8x128xf32>
    %45 = tpu.reciprocal %44 {approx = true} : vector<8x128xf32> -> vector<8x128xf32>
    %46 = arith.truncf %45 : vector<8x128xf32> to vector<8x128xbf16>
    %cst_22 = arith.constant -1.600000e+01 : f32
    %47 = vector.broadcast %cst_22 : f32 to vector<8x128xf32>
    %48 = arith.subf %32, %47 : vector<8x128xf32>
    %49 = arith.mulf %48, %48 : vector<8x128xf32>
    %cst_23 = arith.constant 1.000000e+00 : f32
    %50 = vector.broadcast %cst_23 : f32 to vector<8x128xf32>
    %51 = arith.addf %49, %50 : vector<8x128xf32>
    %52 = tpu.reciprocal %51 {approx = true} : vector<8x128xf32> -> vector<8x128xf32>
    %53 = arith.truncf %52 : vector<8x128xf32> to vector<8x128xbf16>
    %cst_24 = arith.constant -1.200000e+01 : f32
    %54 = vector.broadcast %cst_24 : f32 to vector<8x128xf32>
    %55 = arith.subf %32, %54 : vector<8x128xf32>
    %56 = arith.mulf %55, %55 : vector<8x128xf32>
    %cst_25 = arith.constant 1.000000e+00 : f32
    %57 = vector.broadcast %cst_25 : f32 to vector<8x128xf32>
    %58 = arith.addf %56, %57 : vector<8x128xf32>
    %59 = tpu.reciprocal %58 {approx = true} : vector<8x128xf32> -> vector<8x128xf32>
    %60 = arith.truncf %59 : vector<8x128xf32> to vector<8x128xbf16>
    %cst_26 = arith.constant -8.000000e+00 : f32
    %61 = vector.broadcast %cst_26 : f32 to vector<8x128xf32>
    %62 = arith.subf %32, %61 : vector<8x128xf32>
    %63 = arith.mulf %62, %62 : vector<8x128xf32>
    %cst_27 = arith.constant 1.000000e+00 : f32
    %64 = vector.broadcast %cst_27 : f32 to vector<8x128xf32>
    %65 = arith.addf %63, %64 : vector<8x128xf32>
    %66 = tpu.reciprocal %65 {approx = true} : vector<8x128xf32> -> vector<8x128xf32>
    %67 = arith.truncf %66 : vector<8x128xf32> to vector<8x128xbf16>
    %cst_28 = arith.constant -4.000000e+00 : f32
    %68 = vector.broadcast %cst_28 : f32 to vector<8x128xf32>
    %69 = arith.subf %32, %68 : vector<8x128xf32>
    %70 = arith.mulf %69, %69 : vector<8x128xf32>
    %cst_29 = arith.constant 1.000000e+00 : f32
    %71 = vector.broadcast %cst_29 : f32 to vector<8x128xf32>
    %72 = arith.addf %70, %71 : vector<8x128xf32>
    %73 = tpu.reciprocal %72 {approx = true} : vector<8x128xf32> -> vector<8x128xf32>
    %74 = arith.truncf %73 : vector<8x128xf32> to vector<8x128xbf16>
    %cst_30 = arith.constant 0.000000e+00 : f32
    %75 = vector.broadcast %cst_30 : f32 to vector<8x128xf32>
    %76 = arith.subf %32, %75 : vector<8x128xf32>
    %77 = arith.mulf %76, %76 : vector<8x128xf32>
    %cst_31 = arith.constant 1.000000e+00 : f32
    %78 = vector.broadcast %cst_31 : f32 to vector<8x128xf32>
    %79 = arith.addf %77, %78 : vector<8x128xf32>
    %80 = tpu.reciprocal %79 {approx = true} : vector<8x128xf32> -> vector<8x128xf32>
    %81 = arith.truncf %80 : vector<8x128xf32> to vector<8x128xbf16>
    %cst_32 = arith.constant 4.000000e+00 : f32
    %82 = vector.broadcast %cst_32 : f32 to vector<8x128xf32>
    %83 = arith.subf %32, %82 : vector<8x128xf32>
    %84 = arith.mulf %83, %83 : vector<8x128xf32>
    %cst_33 = arith.constant 1.000000e+00 : f32
    %85 = vector.broadcast %cst_33 : f32 to vector<8x128xf32>
    %86 = arith.addf %84, %85 : vector<8x128xf32>
    %87 = tpu.reciprocal %86 {approx = true} : vector<8x128xf32> -> vector<8x128xf32>
    %88 = arith.truncf %87 : vector<8x128xf32> to vector<8x128xbf16>
    %cst_34 = arith.constant 8.000000e+00 : f32
    %89 = vector.broadcast %cst_34 : f32 to vector<8x128xf32>
    %90 = arith.subf %32, %89 : vector<8x128xf32>
    %91 = arith.mulf %90, %90 : vector<8x128xf32>
    %cst_35 = arith.constant 1.000000e+00 : f32
    %92 = vector.broadcast %cst_35 : f32 to vector<8x128xf32>
    %93 = arith.addf %91, %92 : vector<8x128xf32>
    %94 = tpu.reciprocal %93 {approx = true} : vector<8x128xf32> -> vector<8x128xf32>
    %95 = arith.truncf %94 : vector<8x128xf32> to vector<8x128xbf16>
    %cst_36 = arith.constant 1.200000e+01 : f32
    %96 = vector.broadcast %cst_36 : f32 to vector<8x128xf32>
    %97 = arith.subf %32, %96 : vector<8x128xf32>
    %98 = arith.mulf %97, %97 : vector<8x128xf32>
    %cst_37 = arith.constant 1.000000e+00 : f32
    %99 = vector.broadcast %cst_37 : f32 to vector<8x128xf32>
    %100 = arith.addf %98, %99 : vector<8x128xf32>
    %101 = tpu.reciprocal %100 {approx = true} : vector<8x128xf32> -> vector<8x128xf32>
    %102 = arith.truncf %101 : vector<8x128xf32> to vector<8x128xbf16>
    %cst_38 = arith.constant 1.600000e+01 : f32
    %103 = vector.broadcast %cst_38 : f32 to vector<8x128xf32>
    %104 = arith.subf %32, %103 : vector<8x128xf32>
    %105 = arith.mulf %104, %104 : vector<8x128xf32>
    %cst_39 = arith.constant 1.000000e+00 : f32
    %106 = vector.broadcast %cst_39 : f32 to vector<8x128xf32>
    %107 = arith.addf %105, %106 : vector<8x128xf32>
    %108 = tpu.reciprocal %107 {approx = true} : vector<8x128xf32> -> vector<8x128xf32>
    %109 = arith.truncf %108 : vector<8x128xf32> to vector<8x128xbf16>
    %cst_40 = arith.constant 2.000000e+01 : f32
    %110 = vector.broadcast %cst_40 : f32 to vector<8x128xf32>
    %111 = arith.subf %32, %110 : vector<8x128xf32>
    %112 = arith.mulf %111, %111 : vector<8x128xf32>
    %cst_41 = arith.constant 1.000000e+00 : f32
    %113 = vector.broadcast %cst_41 : f32 to vector<8x128xf32>
    %114 = arith.addf %112, %113 : vector<8x128xf32>
    %115 = tpu.reciprocal %114 {approx = true} : vector<8x128xf32> -> vector<8x128xf32>
    %116 = arith.truncf %115 : vector<8x128xf32> to vector<8x128xbf16>
    %cst_42 = arith.constant 2.400000e+01 : f32
    %117 = vector.broadcast %cst_42 : f32 to vector<8x128xf32>
    %118 = arith.subf %32, %117 : vector<8x128xf32>
    %119 = arith.mulf %118, %118 : vector<8x128xf32>
    %cst_43 = arith.constant 1.000000e+00 : f32
    %120 = vector.broadcast %cst_43 : f32 to vector<8x128xf32>
    %121 = arith.addf %119, %120 : vector<8x128xf32>
    %122 = tpu.reciprocal %121 {approx = true} : vector<8x128xf32> -> vector<8x128xf32>
    %123 = arith.truncf %122 : vector<8x128xf32> to vector<8x128xbf16>
    %124 = tpu.concatenate %39, %46, %53, %60, %67, %74, %81, %88, %95, %102, %109, %116, %123 in 1 : vector<8x128xbf16>, vector<8x128xbf16>, vector<8x128xbf16>, vector<8x128xbf16>, vector<8x128xbf16>, vector<8x128xbf16>, vector<8x128xbf16>, vector<8x128xbf16>, vector<8x128xbf16>, vector<8x128xbf16>, vector<8x128xbf16>, vector<8x128xbf16>, vector<8x128xbf16> -> vector<8x1664xbf16>
    %c0_44 = arith.constant 0 : index
    %c0_45 = arith.constant 0 : index
    %125 = vector.load %arg7[%c0_44, %c0_45] : memref<1664x128xbf16, #tpu.memory_space<vmem>>, vector<1664x128xbf16>
    %cst_46 = arith.constant dense<0.000000e+00> : vector<8x128xf32>
    %126 = tpu.matmul %124, %125, %cst_46 {dimension_numbers = #tpu.dot_dimension_numbers<[1], [0], [0], [1], [0, 0, 1, 1], [], []>} : vector<8x1664xbf16>, vector<1664x128xbf16>, vector<8x128xf32> -> vector<8x128xf32>
    %127 = arith.addf %12, %126 : vector<8x128xf32>
    %c0_47 = arith.constant 0 : index
    %c0_48 = arith.constant 0 : index
    %128 = vector.load %arg8[%c0_47, %c0_48] : memref<8x128xf32, #tpu.memory_space<vmem>>, vector<8x128xf32>
    tpu.vector_store %arg8[%c0_47, %c0_48], %127 {strides = array<i32>} : memref<8x128xf32, #tpu.memory_space<vmem>>, vector<8x128xf32>,
    return
  }
  func.func @transform_0(%arg0: i32) -> (i32, i32) {
    %c0_i32 = arith.constant 0 : i32
    %c0_i32_0 = arith.constant 0 : i32
    return %arg0, %c0_i32 : i32, i32
  }
  func.func @transform_1(%arg0: i32) -> (i32, i32) {
    %c0_i32 = arith.constant 0 : i32
    %c0_i32_0 = arith.constant 0 : i32
    %c0_i32_1 = arith.constant 0 : i32
    return %c0_i32, %c0_i32_0 : i32, i32
  }
  func.func @transform_2(%arg0: i32) -> (i32, i32) {
    %c0_i32 = arith.constant 0 : i32
    %c0_i32_0 = arith.constant 0 : i32
    %c0_i32_1 = arith.constant 0 : i32
    return %c0_i32, %c0_i32_0 : i32, i32
  }
  func.func @transform_3(%arg0: i32) -> (i32, i32) {
    %c0_i32 = arith.constant 0 : i32
    %c0_i32_0 = arith.constant 0 : i32
    %c0_i32_1 = arith.constant 0 : i32
    return %c0_i32, %c0_i32_0 : i32, i32
  }
  func.func @transform_4(%arg0: i32) -> (i32, i32) {
    %c0_i32 = arith.constant 0 : i32
    %c0_i32_0 = arith.constant 0 : i32
    %c0_i32_1 = arith.constant 0 : i32
    return %c0_i32, %c0_i32_0 : i32, i32
  }
  func.func @transform_5(%arg0: i32) -> (i32, i32) {
    %c0_i32 = arith.constant 0 : i32
    %c0_i32_0 = arith.constant 0 : i32
    %c0_i32_1 = arith.constant 0 : i32
    return %c0_i32, %c0_i32_0 : i32, i32
  }
  func.func @transform_6(%arg0: i32) -> (i32, i32) {
    %c0_i32 = arith.constant 0 : i32
    %c0_i32_0 = arith.constant 0 : i32
    %c0_i32_1 = arith.constant 0 : i32
    return %c0_i32, %c0_i32_0 : i32, i32
  }
  func.func @transform_7(%arg0: i32) -> (i32, i32) {
    %c0_i32 = arith.constant 0 : i32
    %c0_i32_0 = arith.constant 0 : i32
    return %arg0, %c0_i32 : i32, i32
  }
}

</mosaic_0001>

<llo_original>
// kernel: lorentzian_kan_forward.1
$region0: #{lorentzian_kan_forward.1}
  #allocation0 [shape = 'u32[]', space=smem, size = 0x4, offset = 0x4, fixed_abs, tag = 'smem constant byte address 0x4 - core index']
  #allocation1 [shape = 'u32[144,128]{1,0:T(1,128)}', space=vmem, size = 0x12000, scoped, tag = 'internal scratch']
  %s0 = inlined_call_operand.vmem [shape: f32[8,128], index: 0, kind: input, shape index: {}]
  %s1 = inlined_call_operand.vmem [shape: f32[1,128], index: 1, kind: input, shape index: {}]
  %s2 = inlined_call_operand.vmem [shape: f32[1,128], index: 2, kind: input, shape index: {}]
  %s3 = inlined_call_operand.vmem [shape: f32[128,128], index: 3, kind: input, shape index: {}]
  %s4 = inlined_call_operand.vmem [shape: bf16[128,128], index: 4, kind: input, shape index: {}]
  %s5 = inlined_call_operand.vmem [shape: f32[1,128], index: 5, kind: input, shape index: {}]
  %s6 = inlined_call_operand.vmem [shape: bf16[1664,128], index: 6, kind: input, shape index: {}]
  %s7 = inlined_call_operand.vmem [shape: f32[8,128], index: 7, kind: output, shape index: {}]
  %s8 = sld [smem:[#allocation0]]
  $region38: #{lorentzian_kan_forward.1} parent=0
    _
  %s10 = ssub.s32 1, %s8
  %s11 = scalar_select 0, %s10, %s8
  // Predicated region
  $region2: #{lorentzian_kan_forward.1} parent=0 // pred_check
    _
  $region3: #{lorentzian_kan_forward.1} parent=0 // pred_check_branch
    %13 = sbr.rel (0) target = $region5
  $region4: #{lorentzian_kan_forward.1} parent=0 // pred_region
    _
  $region5: #{lorentzian_kan_forward.1} parent=0 // pred_fallthru
    _
  // Predicated region
  $region6: #{lorentzian_kan_forward.1} parent=0 // pred_check
    _
  $region7: #{lorentzian_kan_forward.1} parent=0 // pred_check_branch
    %15 = sbr.rel (0) target = $region9
  $region8: #{lorentzian_kan_forward.1} parent=0 // pred_region
    _
  $region9: #{lorentzian_kan_forward.1} parent=0 // pred_fallthru
    _
  // Predicated region
  $region10: #{lorentzian_kan_forward.1} parent=0 // pred_check
    _
  $region11: #{lorentzian_kan_forward.1} parent=0 // pred_check_branch
    %17 = sbr.rel (0) target = $region13
  $region12: #{lorentzian_kan_forward.1} parent=0 // pred_region
    _
  $region13: #{lorentzian_kan_forward.1} parent=0 // pred_fallthru
    _
  // Predicated region
  $region14: #{lorentzian_kan_forward.1} parent=0 // pred_check
    _
  $region15: #{lorentzian_kan_forward.1} parent=0 // pred_check_branch
    %19 = sbr.rel (0) target = $region17
  $region16: #{lorentzian_kan_forward.1} parent=0 // pred_region
    _
  $region17: #{lorentzian_kan_forward.1} parent=0 // pred_fallthru
    _
  // Predicated region
  $region18: #{lorentzian_kan_forward.1} parent=0 // pred_check
    _
  $region19: #{lorentzian_kan_forward.1} parent=0 // pred_check_branch
    %21 = sbr.rel (0) target = $region21
  $region20: #{lorentzian_kan_forward.1} parent=0 // pred_region
    _
  $region21: #{lorentzian_kan_forward.1} parent=0 // pred_fallthru
    _
  // Predicated region
  $region22: #{lorentzian_kan_forward.1} parent=0 // pred_check
    _
  $region23: #{lorentzian_kan_forward.1} parent=0 // pred_check_branch
    %23 = sbr.rel (0) target = $region25
  $region24: #{lorentzian_kan_forward.1} parent=0 // pred_region
    _
  $region25: #{lorentzian_kan_forward.1} parent=0 // pred_fallthru
    _
  // Predicated region
  $region26: #{lorentzian_kan_forward.1} parent=0 // pred_check
    _
  $region27: #{lorentzian_kan_forward.1} parent=0 // pred_check_branch
    %25 = sbr.rel (0) target = $region29
  $region28: #{lorentzian_kan_forward.1} parent=0 // pred_region
    _
  $region29: #{lorentzian_kan_forward.1} parent=0 // pred_fallthru
    _
  %v27 = vld [vmem:[%s0] sm:$0xff]
  %v28 = vxor.u32 %v27, 2147483648
  %v29 = vmul.f32 %v28, 1.442695
  %v30 = vpow.pop %v29
  %v31 = vadd.f32 %v30, 1.0
  %v32 = vrcp.pop %v31
  %v33 = vmul.f32 1.0, %v32
  %v34 = vmul.f32 %v27, %v33
  %v35 = vpack.c.bf16 %v34, %v34
  %v36 = vld [vmem:[%s4] sm:$0xf]
  %v37 = vld [vmem:[%s4 + $0x4] sm:$0xf]
  %v38 = vld [vmem:[%s4 + $0x8] sm:$0xf]
  %v39 = vld [vmem:[%s4 + $0xc] sm:$0xf]
  %v40 = vld [vmem:[%s4 + $0x10] sm:$0xf]
  %v41 = vld [vmem:[%s4 + $0x14] sm:$0xf]
  %v42 = vld [vmem:[%s4 + $0x18] sm:$0xf]
  %v43 = vld [vmem:[%s4 + $0x1c] sm:$0xf]
  %v44 = vld [vmem:[%s4 + $0x20] sm:$0xf]
  %v45 = vld [vmem:[%s4 + $0x24] sm:$0xf]
  %v46 = vld [vmem:[%s4 + $0x28] sm:$0xf]
  %v47 = vld [vmem:[%s4 + $0x2c] sm:$0xf]
  %v48 = vld [vmem:[%s4 + $0x30] sm:$0xf]
  %v49 = vld [vmem:[%s4 + $0x34] sm:$0xf]
  %v50 = vld [vmem:[%s4 + $0x38] sm:$0xf]
  %v51 = vld [vmem:[%s4 + $0x3c] sm:$0xf]
  %v52 = vld [vmem:[%s5] sm:$0x1]
  %v54 = vlaneseq
  %v55 = vshrl.u32 %v54, 7
  %v56 = vsub.s32 0, %v55
  %v57 = vrot.slane %v52, %v56
  %v75 = vunpack.c.l.b16 %v36
  %v76 = vunpack.c.l.b16 %v37
  %v77 = vunpack.c.l.b16 %v38
  %v78 = vunpack.c.l.b16 %v39
  %v79 = vunpack.c.l.b16 %v40
  %v80 = vunpack.c.l.b16 %v41
  %v81 = vunpack.c.l.b16 %v42
  %v82 = vunpack.c.l.b16 %v43
  %v83 = vunpack.c.l.b16 %v44
  %v84 = vunpack.c.l.b16 %v45
  %v85 = vunpack.c.l.b16 %v46
  %v86 = vunpack.c.l.b16 %v47
  %v87 = vunpack.c.l.b16 %v48
  %v88 = vunpack.c.l.b16 %v49
  %v89 = vunpack.c.l.b16 %v50
  %v90 = vunpack.c.l.b16 %v51
  %v91 = vpack.c.b16 %v76, %v75
  %v92 = vpack.c.b16 %v78, %v77
  %v93 = vpack.c.b16 %v80, %v79
  %v94 = vpack.c.b16 %v82, %v81
  %v95 = vpack.c.b16 %v84, %v83
  %v96 = vpack.c.b16 %v86, %v85
  %v97 = vpack.c.b16 %v88, %v87
  %v98 = vpack.c.b16 %v90, %v89
  %107 = vmatprep.subr.bf16.mxu0 0
  %108 = vmatpush1.bf16.msra.mxu0 %v91
  %109 = vmatprep.subr.bf16.mxu0 0
  %110 = vmatpush1.bf16.msra.mxu0 %v92
  %111 = vmatprep.subr.bf16.mxu0 0
  %112 = vmatpush1.bf16.msra.mxu0 %v93
  %113 = vmatprep.subr.bf16.mxu0 0
  %114 = vmatpush1.bf16.msra.mxu0 %v94
  %115 = vmatprep.subr.bf16.mxu0 0
  %116 = vmatpush1.bf16.msra.mxu0 %v95
  %117 = vmatprep.subr.bf16.mxu0 0
  %118 = vmatpush1.bf16.msra.mxu0 %v96
  %119 = vmatprep.subr.bf16.mxu0 0
  %120 = vmatpush1.bf16.msra.mxu0 %v97
  %121 = vmatprep.subr.bf16.mxu0 0
  %122 = vmatpush1.bf16.msra.mxu0 %v98
  %123 = vmatprep.subr.bf16.mxu0 0
  %124 = vmatpush1.bf16.msra.mxu0 0
  %125 = vmatprep.subr.bf16.mxu0 0
  %126 = vmatpush1.bf16.msra.mxu0 0
  %127 = vmatprep.subr.bf16.mxu0 0
  %128 = vmatpush1.bf16.msra.mxu0 0
  %129 = vmatprep.subr.bf16.mxu0 0
  %130 = vmatpush1.bf16.msra.mxu0 0
  %131 = vmatprep.subr.bf16.mxu0 0
  %132 = vmatpush1.bf16.msra.mxu0 0
  %133 = vmatprep.subr.bf16.mxu0 0
  %134 = vmatpush1.bf16.msra.mxu0 0
  %135 = vmatprep.subr.bf16.mxu0 0
  %136 = vmatpush1.bf16.msra.mxu0 0
  %137 = vmatprep.subr.bf16.mxu0 0
  %138 = vmatpush1.bf16.msra.mxu0 0
  %139 = vmatprep.mubr.bf16.mxu0 0
  %140 = vmatmul.mubr.bf16.gmra.mrb[0].mxu0 %v35
  %v141 = vpop.f32.mrb[0].mxu0
  %v142 = vadd.f32 %v57, %v141
  %v143 = vpop.f32.mrb[0].mxu0
  %v144 = vpop.f32.mrb[0].mxu0
  %v145 = vpop.f32.mrb[0].mxu0
  %146 = vdwg.mxu0
  %v147 = vld [vmem:[%s3] sm:$0xff]
  %v148 = vld [vmem:[%s3 + $0x8] sm:$0xff]
  %v149 = vld [vmem:[%s3 + $0x10] sm:$0xff]
  %v150 = vld [vmem:[%s3 + $0x18] sm:$0xff]
  %v151 = vld [vmem:[%s3 + $0x20] sm:$0xff]
  %v152 = vld [vmem:[%s3 + $0x28] sm:$0xff]
  %v153 = vld [vmem:[%s3 + $0x30] sm:$0xff]
  %v154 = vld [vmem:[%s3 + $0x38] sm:$0xff]
  %v155 = vld [vmem:[%s3 + $0x40] sm:$0xff]
  %v156 = vld [vmem:[%s3 + $0x48] sm:$0xff]
  %v157 = vld [vmem:[%s3 + $0x50] sm:$0xff]
  %v158 = vld [vmem:[%s3 + $0x58] sm:$0xff]
  %v159 = vld [vmem:[%s3 + $0x60] sm:$0xff]
  %v160 = vld [vmem:[%s3 + $0x68] sm:$0xff]
  %v161 = vld [vmem:[%s3 + $0x70] sm:$0xff]
  %v162 = vld [vmem:[%s3 + $0x78] sm:$0xff]
  %163 = vmatprep.subr.mxu0 0.0
  %164 = vmatpush1.msra.mxu0 %v147
  %165 = vmatprep.subr.mxu0 0.0
  %166 = vmatpush1.msra.mxu0 %v148
  %167 = vmatprep.subr.mxu0 0.0
  %168 = vmatpush1.msra.mxu0 %v149
  %169 = vmatprep.subr.mxu0 0.0
  %170 = vmatpush1.msra.mxu0 %v150
  %171 = vmatprep.subr.mxu0 0.0
  %172 = vmatpush1.msra.mxu0 %v151
  %173 = vmatprep.subr.mxu0 0.0
  %174 = vmatpush1.msra.mxu0 %v152
  %175 = vmatprep.subr.mxu0 0.0
  %176 = vmatpush1.msra.mxu0 %v153
  %177 = vmatprep.subr.mxu0 0.0
  %178 = vmatpush1.msra.mxu0 %v154
  %179 = vmatprep.subr.mxu0 0.0
  %180 = vmatpush1.msra.mxu0 %v155
  %181 = vmatprep.subr.mxu0 0.0
  %182 = vmatpush1.msra.mxu0 %v156
  %183 = vmatprep.subr.mxu0 0.0
  %184 = vmatpush1.msra.mxu0 %v157
  %185 = vmatprep.subr.mxu0 0.0
  %186 = vmatpush1.msra.mxu0 %v158
  %187 = vmatprep.subr.mxu0 0.0
  %188 = vmatpush1.msra.mxu0 %v159
  %189 = vmatprep.subr.mxu0 0.0
  %190 = vmatpush1.msra.mxu0 %v160
  %191 = vmatprep.subr.mxu0 0.0
  %192 = vmatpush1.msra.mxu0 %v161
  %193 = vmatprep.subr.mxu0 0.0
  %194 = vmatpush1.msra.mxu0 %v162
  %195 = vmatprep.subr.mxu0 0.0
  %196 = vmatpush1.msra.mxu0 0.0
  %197 = vmatprep.subr.mxu0 0.0
  %198 = vmatpush1.msra.mxu0 0.0
  %199 = vmatprep.subr.mxu0 0.0
  %200 = vmatpush1.msra.mxu0 0.0
  %201 = vmatprep.subr.mxu0 0.0
  %202 = vmatpush1.msra.mxu0 0.0
  %203 = vmatprep.subr.mxu0 0.0
  %204 = vmatpush1.msra.mxu0 0.0
  %205 = vmatprep.subr.mxu0 0.0
  %206 = vmatpush1.msra.mxu0 0.0
  %207 = vmatprep.subr.mxu0 0.0
  %208 = vmatpush1.msra.mxu0 0.0
  %209 = vmatprep.subr.mxu0 0.0
  %210 = vmatpush1.msra.mxu0 0.0
  %211 = vmatprep.subr.mxu0 0.0
  %212 = vmatpush1.msra.mxu0 0.0
  %213 = vmatprep.subr.mxu0 0.0
  %214 = vmatpush1.msra.mxu0 0.0
  %215 = vmatprep.subr.mxu0 0.0
  %216 = vmatpush1.msra.mxu0 0.0
  %217 = vmatprep.subr.mxu0 0.0
  %218 = vmatpush1.msra.mxu0 0.0
  %219 = vmatprep.subr.mxu0 0.0
  %220 = vmatpush1.msra.mxu0 0.0
  %221 = vmatprep.subr.mxu0 0.0
  %222 = vmatpush1.msra.mxu0 0.0
  %223 = vmatprep.subr.mxu0 0.0
  %224 = vmatpush1.msra.mxu0 0.0
  %225 = vmatprep.subr.mxu0 0.0
  %226 = vmatpush1.msra.mxu0 0.0
  %227 = vmatprep.mubr.f32.mxu0 0.0
  %228 = vmatmul.mubr.f32.gmra.mrb[0].mxu0 %v27
  %v229 = vpop.f32.mrb[0].mxu0
  %v230 = vadd.f32 0.0, %v229
  %v231 = vpop.f32.mrb[0].mxu0
  %232 = vdwg.mxu0
  %v233 = vmul.f32 %v27, %v27
  %234 = vmatprep.subr.mxu0 0.0
  %235 = vmatpush1.msra.mxu0 %v147
  %236 = vmatprep.subr.mxu0 0.0
  %237 = vmatpush1.msra.mxu0 %v148
  %238 = vmatprep.subr.mxu0 0.0
  %239 = vmatpush1.msra.mxu0 %v149
  %240 = vmatprep.subr.mxu0 0.0
  %241 = vmatpush1.msra.mxu0 %v150
  %242 = vmatprep.subr.mxu0 0.0
  %243 = vmatpush1.msra.mxu0 %v151
  %244 = vmatprep.subr.mxu0 0.0
  %245 = vmatpush1.msra.mxu0 %v152
  %246 = vmatprep.subr.mxu0 0.0
  %247 = vmatpush1.msra.mxu0 %v153
  %248 = vmatprep.subr.mxu0 0.0
  %249 = vmatpush1.msra.mxu0 %v154
  %250 = vmatprep.subr.mxu0 0.0
  %251 = vmatpush1.msra.mxu0 %v155
  %252 = vmatprep.subr.mxu0 0.0
  %253 = vmatpush1.msra.mxu0 %v156
  %254 = vmatprep.subr.mxu0 0.0
  %255 = vmatpush1.msra.mxu0 %v157
  %256 = vmatprep.subr.mxu0 0.0
  %257 = vmatpush1.msra.mxu0 %v158
  %258 = vmatprep.subr.mxu0 0.0
  %259 = vmatpush1.msra.mxu0 %v159
  %260 = vmatprep.subr.mxu0 0.0
  %261 = vmatpush1.msra.mxu0 %v160
  %262 = vmatprep.subr.mxu0 0.0
  %263 = vmatpush1.msra.mxu0 %v161
  %264 = vmatprep.subr.mxu0 0.0
  %265 = vmatpush1.msra.mxu0 %v162
  %266 = vmatprep.subr.mxu0 0.0
  %267 = vmatpush1.msra.mxu0 0.0
  %268 = vmatprep.subr.mxu0 0.0
  %269 = vmatpush1.msra.mxu0 0.0
  %270 = vmatprep.subr.mxu0 0.0
  %271 = vmatpush1.msra.mxu0 0.0
  %272 = vmatprep.subr.mxu0 0.0
  %273 = vmatpush1.msra.mxu0 0.0
  %274 = vmatprep.subr.mxu0 0.0
  %275 = vmatpush1.msra.mxu0 0.0
  %276 = vmatprep.subr.mxu0 0.0
  %277 = vmatpush1.msra.mxu0 0.0
  %278 = vmatprep.subr.mxu0 0.0
  %279 = vmatpush1.msra.mxu0 0.0
  %280 = vmatprep.subr.mxu0 0.0
  %281 = vmatpush1.msra.mxu0 0.0
  %282 = vmatprep.subr.mxu0 0.0
  %283 = vmatpush1.msra.mxu0 0.0
  %284 = vmatprep.subr.mxu0 0.0
  %285 = vmatpush1.msra.mxu0 0.0
  %286 = vmatprep.subr.mxu0 0.0
  %287 = vmatpush1.msra.mxu0 0.0
  %288 = vmatprep.subr.mxu0 0.0
  %289 = vmatpush1.msra.mxu0 0.0
  %290 = vmatprep.subr.mxu0 0.0
  %291 = vmatpush1.msra.mxu0 0.0
  %292 = vmatprep.subr.mxu0 0.0
  %293 = vmatpush1.msra.mxu0 0.0
  %294 = vmatprep.subr.mxu0 0.0
  %295 = vmatpush1.msra.mxu0 0.0
  %296 = vmatprep.subr.mxu0 0.0
  %297 = vmatpush1.msra.mxu0 0.0
  %298 = vmatprep.mubr.f32.mxu0 0.0
  %299 = vmatmul.mubr.f32.gmra.mrb[0].mxu0 %v233
  %v300 = vpop.f32.mrb[0].mxu0
  %v301 = vadd.f32 0.0, %v300
  %v302 = vpop.f32.mrb[0].mxu0
  %303 = vdwg.mxu0
  %v304 = vmul.f32 %v230, %v230
  %v305 = vsub.f32 %v301, %v304
  %v306 = vmax.f32 %v305, 0.0
  %v307 = vsub.f32 %v27, %v230
  %v308 = vadd.f32 %v306, 1e-05
  %v309 = vrsqrt.pop %v308
  %v310 = vmul.f32 %v307, %v309
  %v311 = vld [vmem:[%s1] sm:$0x1]
  %v313 = vlaneseq
  %v314 = vshrl.u32 %v313, 7
  %v315 = vsub.s32 0, %v314
  %v316 = vrot.slane %v311, %v315
  %v318 = vmul.f32 %v310, %v316
  %v319 = vld [vmem:[%s2] sm:$0x1]
  %v321 = vlaneseq
  %v322 = vshrl.u32 %v321, 7
  %v323 = vsub.s32 0, %v322
  %v324 = vrot.slane %v319, %v323
  %v326 = vadd.f32 %v318, %v324
  %v327 = vsub.f32 %v326, -24.0
  %v328 = vmul.f32 %v327, %v327
  %v329 = vadd.f32 %v328, 1.0
  %v330 = vrcp.pop %v329
  %v331 = vpack.c.bf16 %v330, %v330
  %v332 = vsub.f32 %v326, -20.0
  %v333 = vmul.f32 %v332, %v332
  %v334 = vadd.f32 %v333, 1.0
  %v335 = vrcp.pop %v334
  %v336 = vpack.c.bf16 %v335, %v335
  %v337 = vsub.f32 %v326, -16.0
  %v338 = vmul.f32 %v337, %v337
  %v339 = vadd.f32 %v338, 1.0
  %v340 = vrcp.pop %v339
  %v341 = vpack.c.bf16 %v340, %v340
  %v342 = vsub.f32 %v326, -12.0
  %v343 = vmul.f32 %v342, %v342
  %v344 = vadd.f32 %v343, 1.0
  %v345 = vrcp.pop %v344
  %v346 = vpack.c.bf16 %v345, %v345
  %v347 = vsub.f32 %v326, -8.0
  %v348 = vmul.f32 %v347, %v347
  %v349 = vadd.f32 %v348, 1.0
  %v350 = vrcp.pop %v349
  %v351 = vpack.c.bf16 %v350, %v350
  %v352 = vsub.f32 %v326, -4.0
  %v353 = vmul.f32 %v352, %v352
  %v354 = vadd.f32 %v353, 1.0
  %v355 = vrcp.pop %v354
  %v356 = vpack.c.bf16 %v355, %v355
  %v357 = vmul.f32 %v326, %v326
  %v358 = vadd.f32 %v357, 1.0
  %v359 = vrcp.pop %v358
  %v360 = vpack.c.bf16 %v359, %v359
  %v361 = vsub.f32 %v326, 4.0
  %v362 = vmul.f32 %v361, %v361
  %v363 = vadd.f32 %v362, 1.0
  %v364 = vrcp.pop %v363
  %v365 = vpack.c.bf16 %v364, %v364
  %v366 = vsub.f32 %v326, 8.0
  %v367 = vmul.f32 %v366, %v366
  %v368 = vadd.f32 %v367, 1.0
  %v369 = vrcp.pop %v368
  %v370 = vpack.c.bf16 %v369, %v369
  %v371 = vsub.f32 %v326, 12.0
  %v372 = vmul.f32 %v371, %v371
  %v373 = vadd.f32 %v372, 1.0
  %v374 = vrcp.pop %v373
  %v375 = vpack.c.bf16 %v374, %v374
  %v376 = vsub.f32 %v326, 16.0
  %v377 = vmul.f32 %v376, %v376
  %v378 = vadd.f32 %v377, 1.0
  %v379 = vrcp.pop %v378
  %v380 = vpack.c.bf16 %v379, %v379
  %v381 = vsub.f32 %v326, 20.0
  %v382 = vmul.f32 %v381, %v381
  %v383 = vadd.f32 %v382, 1.0
  %v384 = vrcp.pop %v383
  %v385 = vpack.c.bf16 %v384, %v384
  %v386 = vsub.f32 %v326, 24.0
  %v387 = vmul.f32 %v386, %v386
  %v388 = vadd.f32 %v387, 1.0
  %v389 = vrcp.pop %v388
  %v390 = vpack.c.bf16 %v389, %v389
  %v391 = vld [vmem:[%s6] sm:$0xf]
  %v392 = vld [vmem:[%s6 + $0x4] sm:$0xf]
  %v393 = vld [vmem:[%s6 + $0x8] sm:$0xf]
  %v394 = vld [vmem:[%s6 + $0xc] sm:$0xf]
  %v395 = vld [vmem:[%s6 + $0x10] sm:$0xf]
  %v396 = vld [vmem:[%s6 + $0x14] sm:$0xf]
  %v397 = vld [vmem:[%s6 + $0x18] sm:$0xf]
  %v398 = vld [vmem:[%s6 + $0x1c] sm:$0xf]
  %v399 = vld [vmem:[%s6 + $0x20] sm:$0xf]
  %v400 = vld [vmem:[%s6 + $0x24] sm:$0xf]
  %v401 = vld [vmem:[%s6 + $0x28] sm:$0xf]
  %v402 = vld [vmem:[%s6 + $0x2c] sm:$0xf]
  %v403 = vld [vmem:[%s6 + $0x30] sm:$0xf]
  %v404 = vld [vmem:[%s6 + $0x34] sm:$0xf]
  %v405 = vld [vmem:[%s6 + $0x38] sm:$0xf]
  %v406 = vld [vmem:[%s6 + $0x3c] sm:$0xf]
  %v407 = vld [vmem:[%s6 + $0x40] sm:$0xf]
  %v408 = vld [vmem:[%s6 + $0x44] sm:$0xf]
  %v409 = vld [vmem:[%s6 + $0x48] sm:$0xf]
  %v410 = vld [vmem:[%s6 + $0x4c] sm:$0xf]
  %v411 = vld [vmem:[%s6 + $0x50] sm:$0xf]
  %v412 = vld [vmem:[%s6 + $0x54] sm:$0xf]
  %v413 = vld [vmem:[%s6 + $0x58] sm:$0xf]
  %v414 = vld [vmem:[%s6 + $0x5c] sm:$0xf]
  %v415 = vld [vmem:[%s6 + $0x60] sm:$0xf]
  %v416 = vld [vmem:[%s6 + $0x64] sm:$0xf]
  %v417 = vld [vmem:[%s6 + $0x68] sm:$0xf]
  %v418 = vld [vmem:[%s6 + $0x6c] sm:$0xf]
  %v419 = vld [vmem:[%s6 + $0x70] sm:$0xf]
  %v420 = vld [vmem:[%s6 + $0x74] sm:$0xf]
  %v421 = vld [vmem:[%s6 + $0x78] sm:$0xf]
  %v422 = vld [vmem:[%s6 + $0x7c] sm:$0xf]
  %v423 = vld [vmem:[%s6 + $0x80] sm:$0xf]
  %v424 = vld [vmem:[%s6 + $0x84] sm:$0xf]
  %v425 = vld [vmem:[%s6 + $0x88] sm:$0xf]
  %v426 = vld [vmem:[%s6 + $0x8c] sm:$0xf]
  %v427 = vld [vmem:[%s6 + $0x90] sm:$0xf]
  %v428 = vld [vmem:[%s6 + $0x94] sm:$0xf]
  %v429 = vld [vmem:[%s6 + $0x98] sm:$0xf]
  %v430 = vld [vmem:[%s6 + $0x9c] sm:$0xf]
  %v431 = vld [vmem:[%s6 + $0xa0] sm:$0xf]
  %v432 = vld [vmem:[%s6 + $0xa4] sm:$0xf]
  %v433 = vld [vmem:[%s6 + $0xa8] sm:$0xf]
  %v434 = vld [vmem:[%s6 + $0xac] sm:$0xf]
  %v435 = vld [vmem:[%s6 + $0xb0] sm:$0xf]
  %v436 = vld [vmem:[%s6 + $0xb4] sm:$0xf]
  %v437 = vld [vmem:[%s6 + $0xb8] sm:$0xf]
  %v438 = vld [vmem:[%s6 + $0xbc] sm:$0xf]
  %v439 = vld [vmem:[%s6 + $0xc0] sm:$0xf]
  %v440 = vld [vmem:[%s6 + $0xc4] sm:$0xf]
  %v441 = vld [vmem:[%s6 + $0xc8] sm:$0xf]
  %v442 = vld [vmem:[%s6 + $0xcc] sm:$0xf]
  %v443 = vld [vmem:[%s6 + $0xd0] sm:$0xf]
  %v444 = vld [vmem:[%s6 + $0xd4] sm:$0xf]
  %v445 = vld [vmem:[%s6 + $0xd8] sm:$0xf]
  %v446 = vld [vmem:[%s6 + $0xdc] sm:$0xf]
  %v447 = vld [vmem:[%s6 + $0xe0] sm:$0xf]
  %v448 = vld [vmem:[%s6 + $0xe4] sm:$0xf]
  %v449 = vld [vmem:[%s6 + $0xe8] sm:$0xf]
  %v450 = vld [vmem:[%s6 + $0xec] sm:$0xf]
  %v451 = vld [vmem:[%s6 + $0xf0] sm:$0xf]
  %v452 = vld [vmem:[%s6 + $0xf4] sm:$0xf]
  %v453 = vld [vmem:[%s6 + $0xf8] sm:$0xf]
  %v454 = vld [vmem:[%s6 + $0xfc] sm:$0xf]
  %v455 = vld [vmem:[%s6 + $0x100] sm:$0xf]
  %v456 = vld [vmem:[%s6 + $0x104] sm:$0xf]
  %v457 = vld [vmem:[%s6 + $0x108] sm:$0xf]
  %v458 = vld [vmem:[%s6 + $0x10c] sm:$0xf]
  %v459 = vld [vmem:[%s6 + $0x110] sm:$0xf]
  %v460 = vld [vmem:[%s6 + $0x114] sm:$0xf]
  %v461 = vld [vmem:[%s6 + $0x118] sm:$0xf]
  %v462 = vld [vmem:[%s6 + $0x11c] sm:$0xf]
  %v463 = vld [vmem:[%s6 + $0x120] sm:$0xf]
  %v464 = vld [vmem:[%s6 + $0x124] sm:$0xf]
  %v465 = vld [vmem:[%s6 + $0x128] sm:$0xf]
  %v466 = vld [vmem:[%s6 + $0x12c] sm:$0xf]
  %v467 = vld [vmem:[%s6 + $0x130] sm:$0xf]
  %v468 = vld [vmem:[%s6 + $0x134] sm:$0xf]
  %v469 = vld [vmem:[%s6 + $0x138] sm:$0xf]
  %v470 = vld [vmem:[%s6 + $0x13c] sm:$0xf]
  %v471 = vld [vmem:[%s6 + $0x140] sm:$0xf]
  %v472 = vld [vmem:[%s6 + $0x144] sm:$0xf]
  %v473 = vld [vmem:[%s6 + $0x148] sm:$0xf]
  %v474 = vld [vmem:[%s6 + $0x14c] sm:$0xf]
  %v475 = vld [vmem:[%s6 + $0x150] sm:$0xf]
  %v476 = vld [vmem:[%s6 + $0x154] sm:$0xf]
  %v477 = vld [vmem:[%s6 + $0x158] sm:$0xf]
  %v478 = vld [vmem:[%s6 + $0x15c] sm:$0xf]
  %v479 = vld [vmem:[%s6 + $0x160] sm:$0xf]
  %v480 = vld [vmem:[%s6 + $0x164] sm:$0xf]
  %v481 = vld [vmem:[%s6 + $0x168] sm:$0xf]
  %v482 = vld [vmem:[%s6 + $0x16c] sm:$0xf]
  %v483 = vld [vmem:[%s6 + $0x170] sm:$0xf]
  %v484 = vld [vmem:[%s6 + $0x174] sm:$0xf]
  %v485 = vld [vmem:[%s6 + $0x178] sm:$0xf]
  %v486 = vld [vmem:[%s6 + $0x17c] sm:$0xf]
  %v487 = vld [vmem:[%s6 + $0x180] sm:$0xf]
  %v488 = vld [vmem:[%s6 + $0x184] sm:$0xf]
  %v489 = vld [vmem:[%s6 + $0x188] sm:$0xf]
  %v490 = vld [vmem:[%s6 + $0x18c] sm:$0xf]
  %v491 = vld [vmem:[%s6 + $0x190] sm:$0xf]
  %v492 = vld [vmem:[%s6 + $0x194] sm:$0xf]
  %v493 = vld [vmem:[%s6 + $0x198] sm:$0xf]
  %v494 = vld [vmem:[%s6 + $0x19c] sm:$0xf]
  %v495 = vld [vmem:[%s6 + $0x1a0] sm:$0xf]
  %v496 = vld [vmem:[%s6 + $0x1a4] sm:$0xf]
  %v497 = vld [vmem:[%s6 + $0x1a8] sm:$0xf]
  %v498 = vld [vmem:[%s6 + $0x1ac] sm:$0xf]
  %v499 = vld [vmem:[%s6 + $0x1b0] sm:$0xf]
  %v500 = vld [vmem:[%s6 + $0x1b4] sm:$0xf]
  %v501 = vld [vmem:[%s6 + $0x1b8] sm:$0xf]
  %v502 = vld [vmem:[%s6 + $0x1bc] sm:$0xf]
  %v503 = vld [vmem:[%s6 + $0x1c0] sm:$0xf]
  %v504 = vld [vmem:[%s6 + $0x1c4] sm:$0xf]
  %v505 = vld [vmem:[%s6 + $0x1c8] sm:$0xf]
  %v506 = vld [vmem:[%s6 + $0x1cc] sm:$0xf]
  %v507 = vld [vmem:[%s6 + $0x1d0] sm:$0xf]
  %v508 = vld [vmem:[%s6 + $0x1d4] sm:$0xf]
  %v509 = vld [vmem:[%s6 + $0x1d8] sm:$0xf]
  %v510 = vld [vmem:[%s6 + $0x1dc] sm:$0xf]
  %v511 = vld [vmem:[%s6 + $0x1e0] sm:$0xf]
  %v512 = vld [vmem:[%s6 + $0x1e4] sm:$0xf]
  %v513 = vld [vmem:[%s6 + $0x1e8] sm:$0xf]
  %v514 = vld [vmem:[%s6 + $0x1ec] sm:$0xf]
  %v515 = vld [vmem:[%s6 + $0x1f0] sm:$0xf]
  %v516 = vld [vmem:[%s6 + $0x1f4] sm:$0xf]
  %v517 = vld [vmem:[%s6 + $0x1f8] sm:$0xf]
  %v518 = vld [vmem:[%s6 + $0x1fc] sm:$0xf]
  %v519 = vld [vmem:[%s6 + $0x200] sm:$0xf]
  %v520 = vld [vmem:[%s6 + $0x204] sm:$0xf]
  %v521 = vld [vmem:[%s6 + $0x208] sm:$0xf]
  %v522 = vld [vmem:[%s6 + $0x20c] sm:$0xf]
  %v523 = vld [vmem:[%s6 + $0x210] sm:$0xf]
  %v524 = vld [vmem:[%s6 + $0x214] sm:$0xf]
  %v525 = vld [vmem:[%s6 + $0x218] sm:$0xf]
  %v526 = vld [vmem:[%s6 + $0x21c] sm:$0xf]
  %v527 = vld [vmem:[%s6 + $0x220] sm:$0xf]
  %v528 = vld [vmem:[%s6 + $0x224] sm:$0xf]
  %v529 = vld [vmem:[%s6 + $0x228] sm:$0xf]
  %v530 = vld [vmem:[%s6 + $0x22c] sm:$0xf]
  %v531 = vld [vmem:[%s6 + $0x230] sm:$0xf]
  %v532 = vld [vmem:[%s6 + $0x234] sm:$0xf]
  %v533 = vld [vmem:[%s6 + $0x238] sm:$0xf]
  %v534 = vld [vmem:[%s6 + $0x23c] sm:$0xf]
  %v535 = vld [vmem:[%s6 + $0x240] sm:$0xf]
  %v536 = vld [vmem:[%s6 + $0x244] sm:$0xf]
  %v537 = vld [vmem:[%s6 + $0x248] sm:$0xf]
  %v538 = vld [vmem:[%s6 + $0x24c] sm:$0xf]
  %v539 = vld [vmem:[%s6 + $0x250] sm:$0xf]
  %v540 = vld [vmem:[%s6 + $0x254] sm:$0xf]
  %v541 = vld [vmem:[%s6 + $0x258] sm:$0xf]
  %v542 = vld [vmem:[%s6 + $0x25c] sm:$0xf]
  %v543 = vld [vmem:[%s6 + $0x260] sm:$0xf]
  %v544 = vld [vmem:[%s6 + $0x264] sm:$0xf]
  %v545 = vld [vmem:[%s6 + $0x268] sm:$0xf]
  %v546 = vld [vmem:[%s6 + $0x26c] sm:$0xf]
  %v547 = vld [vmem:[%s6 + $0x270] sm:$0xf]
  %v548 = vld [vmem:[%s6 + $0x274] sm:$0xf]
  %v549 = vld [vmem:[%s6 + $0x278] sm:$0xf]
  %v550 = vld [vmem:[%s6 + $0x27c] sm:$0xf]
  %v551 = vld [vmem:[%s6 + $0x280] sm:$0xf]
  %v552 = vld [vmem:[%s6 + $0x284] sm:$0xf]
  %v553 = vld [vmem:[%s6 + $0x288] sm:$0xf]
  %v554 = vld [vmem:[%s6 + $0x28c] sm:$0xf]
  %v555 = vld [vmem:[%s6 + $0x290] sm:$0xf]
  %v556 = vld [vmem:[%s6 + $0x294] sm:$0xf]
  %v557 = vld [vmem:[%s6 + $0x298] sm:$0xf]
  %v558 = vld [vmem:[%s6 + $0x29c] sm:$0xf]
  %v559 = vld [vmem:[%s6 + $0x2a0] sm:$0xf]
  %v560 = vld [vmem:[%s6 + $0x2a4] sm:$0xf]
  %v561 = vld [vmem:[%s6 + $0x2a8] sm:$0xf]
  %v562 = vld [vmem:[%s6 + $0x2ac] sm:$0xf]
  %v563 = vld [vmem:[%s6 + $0x2b0] sm:$0xf]
  %v564 = vld [vmem:[%s6 + $0x2b4] sm:$0xf]
  %v565 = vld [vmem:[%s6 + $0x2b8] sm:$0xf]
  %v566 = vld [vmem:[%s6 + $0x2bc] sm:$0xf]
  %v567 = vld [vmem:[%s6 + $0x2c0] sm:$0xf]
  %v568 = vld [vmem:[%s6 + $0x2c4] sm:$0xf]
  %v569 = vld [vmem:[%s6 + $0x2c8] sm:$0xf]
  %v570 = vld [vmem:[%s6 + $0x2cc] sm:$0xf]
  %v571 = vld [vmem:[%s6 + $0x2d0] sm:$0xf]
  %v572 = vld [vmem:[%s6 + $0x2d4] sm:$0xf]
  %v573 = vld [vmem:[%s6 + $0x2d8] sm:$0xf]
  %v574 = vld [vmem:[%s6 + $0x2dc] sm:$0xf]
  %v575 = vld [vmem:[%s6 + $0x2e0] sm:$0xf]
  %v576 = vld [vmem:[%s6 + $0x2e4] sm:$0xf]
  %v577 = vld [vmem:[%s6 + $0x2e8] sm:$0xf]
  %v578 = vld [vmem:[%s6 + $0x2ec] sm:$0xf]
  %v579 = vld [vmem:[%s6 + $0x2f0] sm:$0xf]
  %v580 = vld [vmem:[%s6 + $0x2f4] sm:$0xf]
  %v581 = vld [vmem:[%s6 + $0x2f8] sm:$0xf]
  %v582 = vld [vmem:[%s6 + $0x2fc] sm:$0xf]
  %v583 = vld [vmem:[%s6 + $0x300] sm:$0xf]
  %v584 = vld [vmem:[%s6 + $0x304] sm:$0xf]
  %v585 = vld [vmem:[%s6 + $0x308] sm:$0xf]
  %v586 = vld [vmem:[%s6 + $0x30c] sm:$0xf]
  %v587 = vld [vmem:[%s6 + $0x310] sm:$0xf]
  %v588 = vld [vmem:[%s6 + $0x314] sm:$0xf]
  %v589 = vld [vmem:[%s6 + $0x318] sm:$0xf]
  %v590 = vld [vmem:[%s6 + $0x31c] sm:$0xf]
  %v591 = vld [vmem:[%s6 + $0x320] sm:$0xf]
  %v592 = vld [vmem:[%s6 + $0x324] sm:$0xf]
  %v593 = vld [vmem:[%s6 + $0x328] sm:$0xf]
  %v594 = vld [vmem:[%s6 + $0x32c] sm:$0xf]
  %v595 = vld [vmem:[%s6 + $0x330] sm:$0xf]
  %v596 = vld [vmem:[%s6 + $0x334] sm:$0xf]
  %v597 = vld [vmem:[%s6 + $0x338] sm:$0xf]
  %v598 = vld [vmem:[%s6 + $0x33c] sm:$0xf]
  %v807 = vunpack.c.l.b16 %v391
  %v808 = vunpack.c.l.b16 %v392
  %v809 = vunpack.c.l.b16 %v393
  %v810 = vunpack.c.l.b16 %v394
  %v811 = vunpack.c.l.b16 %v395
  %v812 = vunpack.c.l.b16 %v396
  %v813 = vunpack.c.l.b16 %v397
  %v814 = vunpack.c.l.b16 %v398
  %v815 = vunpack.c.l.b16 %v399
  %v816 = vunpack.c.l.b16 %v400
  %v817 = vunpack.c.l.b16 %v401
  %v818 = vunpack.c.l.b16 %v402
  %v819 = vunpack.c.l.b16 %v403
  %v820 = vunpack.c.l.b16 %v404
  %v821 = vunpack.c.l.b16 %v405
  %v822 = vunpack.c.l.b16 %v406
  %v823 = vunpack.c.l.b16 %v407
  %v824 = vunpack.c.l.b16 %v408
  %v825 = vunpack.c.l.b16 %v409
  %v826 = vunpack.c.l.b16 %v410
  %v827 = vunpack.c.l.b16 %v411
  %v828 = vunpack.c.l.b16 %v412
  %v829 = vunpack.c.l.b16 %v413
  %v830 = vunpack.c.l.b16 %v414
  %v831 = vunpack.c.l.b16 %v415
  %v832 = vunpack.c.l.b16 %v416
  %v833 = vunpack.c.l.b16 %v417
  %v834 = vunpack.c.l.b16 %v418
  %v835 = vunpack.c.l.b16 %v419
  %v836 = vunpack.c.l.b16 %v420
  %v837 = vunpack.c.l.b16 %v421
  %v838 = vunpack.c.l.b16 %v422
  %v839 = vunpack.c.l.b16 %v423
  %v840 = vunpack.c.l.b16 %v424
  %v841 = vunpack.c.l.b16 %v425
  %v842 = vunpack.c.l.b16 %v426
  %v843 = vunpack.c.l.b16 %v427
  %v844 = vunpack.c.l.b16 %v428
  %v845 = vunpack.c.l.b16 %v429
  %v846 = vunpack.c.l.b16 %v430
  %v847 = vunpack.c.l.b16 %v431
  %v848 = vunpack.c.l.b16 %v432
  %v849 = vunpack.c.l.b16 %v433
  %v850 = vunpack.c.l.b16 %v434
  %v851 = vunpack.c.l.b16 %v435
  %v852 = vunpack.c.l.b16 %v436
  %v853 = vunpack.c.l.b16 %v437
  %v854 = vunpack.c.l.b16 %v438
  %v855 = vunpack.c.l.b16 %v439
  %v856 = vunpack.c.l.b16 %v440
  %v857 = vunpack.c.l.b16 %v441
  %v858 = vunpack.c.l.b16 %v442
  %v859 = vunpack.c.l.b16 %v443
  %v860 = vunpack.c.l.b16 %v444
  %v861 = vunpack.c.l.b16 %v445
  %v862 = vunpack.c.l.b16 %v446
  %v863 = vunpack.c.l.b16 %v447
  %v864 = vunpack.c.l.b16 %v448
  %v865 = vunpack.c.l.b16 %v449
  %v866 = vunpack.c.l.b16 %v450
  %v867 = vunpack.c.l.b16 %v451
  %v868 = vunpack.c.l.b16 %v452
  %v869 = vunpack.c.l.b16 %v453
  %v870 = vunpack.c.l.b16 %v454
  %v871 = vunpack.c.l.b16 %v455
  %v872 = vunpack.c.l.b16 %v456
  %v873 = vunpack.c.l.b16 %v457
  %v874 = vunpack.c.l.b16 %v458
  %v875 = vunpack.c.l.b16 %v459
  %v876 = vunpack.c.l.b16 %v460
  %v877 = vunpack.c.l.b16 %v461
  %v878 = vunpack.c.l.b16 %v462
  %v879 = vunpack.c.l.b16 %v463
  %v880 = vunpack.c.l.b16 %v464
  %v881 = vunpack.c.l.b16 %v465
  %v882 = vunpack.c.l.b16 %v466
  %v883 = vunpack.c.l.b16 %v467
  %v884 = vunpack.c.l.b16 %v468
  %v885 = vunpack.c.l.b16 %v469
  %v886 = vunpack.c.l.b16 %v470
  %v887 = vunpack.c.l.b16 %v471
  %v888 = vunpack.c.l.b16 %v472
  %v889 = vunpack.c.l.b16 %v473
  %v890 = vunpack.c.l.b16 %v474
  %v891 = vunpack.c.l.b16 %v475
  %v892 = vunpack.c.l.b16 %v476
  %v893 = vunpack.c.l.b16 %v477
  %v894 = vunpack.c.l.b16 %v478
  %v895 = vunpack.c.l.b16 %v479
  %v896 = vunpack.c.l.b16 %v480
  %v897 = vunpack.c.l.b16 %v481
  %v898 = vunpack.c.l.b16 %v482
  %v899 = vunpack.c.l.b16 %v483
  %v900 = vunpack.c.l.b16 %v484
  %v901 = vunpack.c.l.b16 %v485
  %v902 = vunpack.c.l.b16 %v486
  %v903 = vunpack.c.l.b16 %v487
  %v904 = vunpack.c.l.b16 %v488
  %v905 = vunpack.c.l.b16 %v489
  %v906 = vunpack.c.l.b16 %v490
  %v907 = vunpack.c.l.b16 %v491
  %v908 = vunpack.c.l.b16 %v492
  %v909 = vunpack.c.l.b16 %v493
  %v910 = vunpack.c.l.b16 %v494
  %v911 = vunpack.c.l.b16 %v495
  %v912 = vunpack.c.l.b16 %v496
  %v913 = vunpack.c.l.b16 %v497
  %v914 = vunpack.c.l.b16 %v498
  %v915 = vunpack.c.l.b16 %v499
  %v916 = vunpack.c.l.b16 %v500
  %v917 = vunpack.c.l.b16 %v501
  %v918 = vunpack.c.l.b16 %v502
  %v919 = vunpack.c.l.b16 %v503
  %v920 = vunpack.c.l.b16 %v504
  %v921 = vunpack.c.l.b16 %v505
  %v922 = vunpack.c.l.b16 %v506
  %v923 = vunpack.c.l.b16 %v507
  %v924 = vunpack.c.l.b16 %v508
  %v925 = vunpack.c.l.b16 %v509
  %v926 = vunpack.c.l.b16 %v510
  %v927 = vunpack.c.l.b16 %v511
  %v928 = vunpack.c.l.b16 %v512
  %v929 = vunpack.c.l.b16 %v513
  %v930 = vunpack.c.l.b16 %v514
  %v931 = vunpack.c.l.b16 %v515
  %v932 = vunpack.c.l.b16 %v516
  %v933 = vunpack.c.l.b16 %v517
  %v934 = vunpack.c.l.b16 %v518
  %v935 = vunpack.c.l.b16 %v519
  %v936 = vunpack.c.l.b16 %v520
  %v937 = vunpack.c.l.b16 %v521
  %v938 = vunpack.c.l.b16 %v522
  %v939 = vunpack.c.l.b16 %v523
  %v940 = vunpack.c.l.b16 %v524
  %v941 = vunpack.c.l.b16 %v525
  %v942 = vunpack.c.l.b16 %v526
  %v943 = vunpack.c.l.b16 %v527
  %v944 = vunpack.c.l.b16 %v528
  %v945 = vunpack.c.l.b16 %v529
  %v946 = vunpack.c.l.b16 %v530
  %v947 = vunpack.c.l.b16 %v531
  %v948 = vunpack.c.l.b16 %v532
  %v949 = vunpack.c.l.b16 %v533
  %v950 = vunpack.c.l.b16 %v534
  %v951 = vunpack.c.l.b16 %v535
  %v952 = vunpack.c.l.b16 %v536
  %v953 = vunpack.c.l.b16 %v537
  %v954 = vunpack.c.l.b16 %v538
  %v955 = vunpack.c.l.b16 %v539
  %v956 = vunpack.c.l.b16 %v540
  %v957 = vunpack.c.l.b16 %v541
  %v958 = vunpack.c.l.b16 %v542
  %v959 = vunpack.c.l.b16 %v543
  %v960 = vunpack.c.l.b16 %v544
  %v961 = vunpack.c.l.b16 %v545
  %v962 = vunpack.c.l.b16 %v546
  %v963 = vunpack.c.l.b16 %v547
  %v964 = vunpack.c.l.b16 %v548
  %v965 = vunpack.c.l.b16 %v549
  %v966 = vunpack.c.l.b16 %v550
  %v967 = vunpack.c.l.b16 %v551
  %v968 = vunpack.c.l.b16 %v552
  %v969 = vunpack.c.l.b16 %v553
  %v970 = vunpack.c.l.b16 %v554
  %v971 = vunpack.c.l.b16 %v555
  %v972 = vunpack.c.l.b16 %v556
  %v973 = vunpack.c.l.b16 %v557
  %v974 = vunpack.c.l.b16 %v558
  %v975 = vunpack.c.l.b16 %v559
  %v976 = vunpack.c.l.b16 %v560
  %v977 = vunpack.c.l.b16 %v561
  %v978 = vunpack.c.l.b16 %v562
  %v979 = vunpack.c.l.b16 %v563
  %v980 = vunpack.c.l.b16 %v564
  %v981 = vunpack.c.l.b16 %v565
  %v982 = vunpack.c.l.b16 %v566
  %v983 = vunpack.c.l.b16 %v567
  %v984 = vunpack.c.l.b16 %v568
  %v985 = vunpack.c.l.b16 %v569
  %v986 = vunpack.c.l.b16 %v570
  %v987 = vunpack.c.l.b16 %v571
  %v988 = vunpack.c.l.b16 %v572
  %v989 = vunpack.c.l.b16 %v573
  %v990 = vunpack.c.l.b16 %v574
  %v991 = vunpack.c.l.b16 %v575
  %v992 = vunpack.c.l.b16 %v576
  %v993 = vunpack.c.l.b16 %v577
  %v994 = vunpack.c.l.b16 %v578
  %v995 = vunpack.c.l.b16 %v579
  %v996 = vunpack.c.l.b16 %v580
  %v997 = vunpack.c.l.b16 %v581
  %v998 = vunpack.c.l.b16 %v582
  %v999 = vunpack.c.l.b16 %v583
  %v1000 = vunpack.c.l.b16 %v584
  %v1001 = vunpack.c.l.b16 %v585
  %v1002 = vunpack.c.l.b16 %v586
  %v1003 = vunpack.c.l.b16 %v587
  %v1004 = vunpack.c.l.b16 %v588
  %v1005 = vunpack.c.l.b16 %v589
  %v1006 = vunpack.c.l.b16 %v590
  %v1007 = vunpack.c.l.b16 %v591
  %v1008 = vunpack.c.l.b16 %v592
  %v1009 = vunpack.c.l.b16 %v593
  %v1010 = vunpack.c.l.b16 %v594
  %v1011 = vunpack.c.l.b16 %v595
  %v1012 = vunpack.c.l.b16 %v596
  %v1013 = vunpack.c.l.b16 %v597
  %v1014 = vunpack.c.l.b16 %v598
  %v1015 = vpack.c.b16 %v808, %v807
  %v1016 = vpack.c.b16 %v810, %v809
  %v1017 = vpack.c.b16 %v812, %v811
  %v1018 = vpack.c.b16 %v814, %v813
  %v1019 = vpack.c.b16 %v816, %v815
  %v1020 = vpack.c.b16 %v818, %v817
  %v1021 = vpack.c.b16 %v820, %v819
  %v1022 = vpack.c.b16 %v822, %v821
  %v1023 = vpack.c.b16 %v824, %v823
  %v1024 = vpack.c.b16 %v826, %v825
  %v1025 = vpack.c.b16 %v828, %v827
  %v1026 = vpack.c.b16 %v830, %v829
  %v1027 = vpack.c.b16 %v832, %v831
  %v1028 = vpack.c.b16 %v834, %v833
  %v1029 = vpack.c.b16 %v836, %v835
  %v1030 = vpack.c.b16 %v838, %v837
  %v1031 = vpack.c.b16 %v840, %v839
  %v1032 = vpack.c.b16 %v842, %v841
  %v1033 = vpack.c.b16 %v844, %v843
  %v1034 = vpack.c.b16 %v846, %v845
  %v1035 = vpack.c.b16 %v848, %v847
  %v1036 = vpack.c.b16 %v850, %v849
  %v1037 = vpack.c.b16 %v852, %v851
  %v1038 = vpack.c.b16 %v854, %v853
  %v1039 = vpack.c.b16 %v856, %v855
  %v1040 = vpack.c.b16 %v858, %v857
  %v1041 = vpack.c.b16 %v860, %v859
  %v1042 = vpack.c.b16 %v862, %v861
  %v1043 = vpack.c.b16 %v864, %v863
  %v1044 = vpack.c.b16 %v866, %v865
  %v1045 = vpack.c.b16 %v868, %v867
  %v1046 = vpack.c.b16 %v870, %v869
  %v1047 = vpack.c.b16 %v872, %v871
  %v1048 = vpack.c.b16 %v874, %v873
  %v1049 = vpack.c.b16 %v876, %v875
  %v1050 = vpack.c.b16 %v878, %v877
  %v1051 = vpack.c.b16 %v880, %v879
  %v1052 = vpack.c.b16 %v882, %v881
  %v1053 = vpack.c.b16 %v884, %v883
  %v1054 = vpack.c.b16 %v886, %v885
  %v1055 = vpack.c.b16 %v888, %v887
  %v1056 = vpack.c.b16 %v890, %v889
  %v1057 = vpack.c.b16 %v892, %v891
  %v1058 = vpack.c.b16 %v894, %v893
  %v1059 = vpack.c.b16 %v896, %v895
  %v1060 = vpack.c.b16 %v898, %v897
  %v1061 = vpack.c.b16 %v900, %v899
  %v1062 = vpack.c.b16 %v902, %v901
  %v1063 = vpack.c.b16 %v904, %v903
  %v1064 = vpack.c.b16 %v906, %v905
  %v1065 = vpack.c.b16 %v908, %v907
  %v1066 = vpack.c.b16 %v910, %v909
  %v1067 = vpack.c.b16 %v912, %v911
  %v1068 = vpack.c.b16 %v914, %v913
  %v1069 = vpack.c.b16 %v916, %v915
  %v1070 = vpack.c.b16 %v918, %v917
  %v1071 = vpack.c.b16 %v920, %v919
  %v1072 = vpack.c.b16 %v922, %v921
  %v1073 = vpack.c.b16 %v924, %v923
  %v1074 = vpack.c.b16 %v926, %v925
  %v1075 = vpack.c.b16 %v928, %v927
  %v1076 = vpack.c.b16 %v930, %v929
  %v1077 = vpack.c.b16 %v932, %v931
  %v1078 = vpack.c.b16 %v934, %v933
  %v1079 = vpack.c.b16 %v936, %v935
  %v1080 = vpack.c.b16 %v938, %v937
  %v1081 = vpack.c.b16 %v940, %v939
  %v1082 = vpack.c.b16 %v942, %v941
  %v1083 = vpack.c.b16 %v944, %v943
  %v1084 = vpack.c.b16 %v946, %v945
  %v1085 = vpack.c.b16 %v948, %v947
  %v1086 = vpack.c.b16 %v950, %v949
  %v1087 = vpack.c.b16 %v952, %v951
  %v1088 = vpack.c.b16 %v954, %v953
  %v1089 = vpack.c.b16 %v956, %v955
  %v1090 = vpack.c.b16 %v958, %v957
  %v1091 = vpack.c.b16 %v960, %v959
  %v1092 = vpack.c.b16 %v962, %v961
  %v1093 = vpack.c.b16 %v964, %v963
  %v1094 = vpack.c.b16 %v966, %v965
  %v1095 = vpack.c.b16 %v968, %v967
  %v1096 = vpack.c.b16 %v970, %v969
  %v1097 = vpack.c.b16 %v972, %v971
  %v1098 = vpack.c.b16 %v974, %v973
  %v1099 = vpack.c.b16 %v976, %v975
  %v1100 = vpack.c.b16 %v978, %v977
  %v1101 = vpack.c.b16 %v980, %v979
  %v1102 = vpack.c.b16 %v982, %v981
  %v1103 = vpack.c.b16 %v984, %v983
  %v1104 = vpack.c.b16 %v986, %v985
  %v1105 = vpack.c.b16 %v988, %v987
  %v1106 = vpack.c.b16 %v990, %v989
  %v1107 = vpack.c.b16 %v992, %v991
  %v1108 = vpack.c.b16 %v994, %v993
  %v1109 = vpack.c.b16 %v996, %v995
  %v1110 = vpack.c.b16 %v998, %v997
  %v1111 = vpack.c.b16 %v1000, %v999
  %v1112 = vpack.c.b16 %v1002, %v1001
  %v1113 = vpack.c.b16 %v1004, %v1003
  %v1114 = vpack.c.b16 %v1006, %v1005
  %v1115 = vpack.c.b16 %v1008, %v1007
  %v1116 = vpack.c.b16 %v1010, %v1009
  %v1117 = vpack.c.b16 %v1012, %v1011
  %v1118 = vpack.c.b16 %v1014, %v1013
  %1223 = vmatprep.subr.bf16.mxu0 0
  %1224 = vmatpush1.bf16.msra.mxu0 %v1015
  %1225 = vmatprep.subr.bf16.mxu0 0
  %1226 = vmatpush1.bf16.msra.mxu0 %v1016
  %1227 = vmatprep.subr.bf16.mxu0 0
  %1228 = vmatpush1.bf16.msra.mxu0 %v1017
  %1229 = vmatprep.subr.bf16.mxu0 0
  %1230 = vmatpush1.bf16.msra.mxu0 %v1018
  %1231 = vmatprep.subr.bf16.mxu0 0
  %1232 = vmatpush1.bf16.msra.mxu0 %v1019
  %1233 = vmatprep.subr.bf16.mxu0 0
  %1234 = vmatpush1.bf16.msra.mxu0 %v1020
  %1235 = vmatprep.subr.bf16.mxu0 0
  %1236 = vmatpush1.bf16.msra.mxu0 %v1021
  %1237 = vmatprep.subr.bf16.mxu0 0
  %1238 = vmatpush1.bf16.msra.mxu0 %v1022
  %1239 = vmatprep.subr.bf16.mxu0 0
  %1240 = vmatpush1.bf16.msra.mxu0 %v1023
  %1241 = vmatprep.subr.bf16.mxu0 0
  %1242 = vmatpush1.bf16.msra.mxu0 %v1024
  %1243 = vmatprep.subr.bf16.mxu0 0
  %1244 = vmatpush1.bf16.msra.mxu0 %v1025
  %1245 = vmatprep.subr.bf16.mxu0 0
  %1246 = vmatpush1.bf16.msra.mxu0 %v1026
  %1247 = vmatprep.subr.bf16.mxu0 0
  %1248 = vmatpush1.bf16.msra.mxu0 %v1027
  %1249 = vmatprep.subr.bf16.mxu0 0
  %1250 = vmatpush1.bf16.msra.mxu0 %v1028
  %1251 = vmatprep.subr.bf16.mxu0 0
  %1252 = vmatpush1.bf16.msra.mxu0 %v1029
  %1253 = vmatprep.subr.bf16.mxu0 0
  %1254 = vmatpush1.bf16.msra.mxu0 %v1030
  %1255 = vmatprep.mubr.bf16.mxu0 %v336
  %1256 = vmatmul.mubr.bf16.gmra.mrb[0].mxu0 %v331
  %v1257 = vpop.f32.mrb[0].mxu0
  %v1258 = vadd.f32 0.0, %v1257
  %v1259 = vpop.f32.mrb[0].mxu0
  %v1260 = vpop.f32.mrb[0].mxu0
  %v1261 = vpop.f32.mrb[0].mxu0
  %1262 = vdwg.mxu0
  %1263 = vmatprep.subr.bf16.mxu0 0
  %1264 = vmatpush1.bf16.msra.mxu0 %v1031
  %1265 = vmatprep.subr.bf16.mxu0 0
  %1266 = vmatpush1.bf16.msra.mxu0 %v1032
  %1267 = vmatprep.subr.bf16.mxu0 0
  %1268 = vmatpush1.bf16.msra.mxu0 %v1033
  %1269 = vmatprep.subr.bf16.mxu0 0
  %1270 = vmatpush1.bf16.msra.mxu0 %v1034
  %1271 = vmatprep.subr.bf16.mxu0 0
  %1272 = vmatpush1.bf16.msra.mxu0 %v1035
  %1273 = vmatprep.subr.bf16.mxu0 0
  %1274 = vmatpush1.bf16.msra.mxu0 %v1036
  %1275 = vmatprep.subr.bf16.mxu0 0
  %1276 = vmatpush1.bf16.msra.mxu0 %v1037
  %1277 = vmatprep.subr.bf16.mxu0 0
  %1278 = vmatpush1.bf16.msra.mxu0 %v1038
  %1279 = vmatprep.subr.bf16.mxu0 0
  %1280 = vmatpush1.bf16.msra.mxu0 %v1039
  %1281 = vmatprep.subr.bf16.mxu0 0
  %1282 = vmatpush1.bf16.msra.mxu0 %v1040
  %1283 = vmatprep.subr.bf16.mxu0 0
  %1284 = vmatpush1.bf16.msra.mxu0 %v1041
  %1285 = vmatprep.subr.bf16.mxu0 0
  %1286 = vmatpush1.bf16.msra.mxu0 %v1042
  %1287 = vmatprep.subr.bf16.mxu0 0
  %1288 = vmatpush1.bf16.msra.mxu0 %v1043
  %1289 = vmatprep.subr.bf16.mxu0 0
  %1290 = vmatpush1.bf16.msra.mxu0 %v1044
  %1291 = vmatprep.subr.bf16.mxu0 0
  %1292 = vmatpush1.bf16.msra.mxu0 %v1045
  %1293 = vmatprep.subr.bf16.mxu0 0
  %1294 = vmatpush1.bf16.msra.mxu0 %v1046
  %1295 = vmatprep.mubr.bf16.mxu0 %v346
  %1296 = vmatmul.mubr.bf16.gmra.mrb[0].mxu0 %v341
  %v1297 = vpop.f32.mrb[0].mxu0
  %v1298 = vadd.f32 %v1258, %v1297
  %v1299 = vpop.f32.mrb[0].mxu0
  %v1300 = vpop.f32.mrb[0].mxu0
  %v1301 = vpop.f32.mrb[0].mxu0
  %1302 = vdwg.mxu0
  %1303 = vmatprep.subr.bf16.mxu0 0
  %1304 = vmatpush1.bf16.msra.mxu0 %v1047
  %1305 = vmatprep.subr.bf16.mxu0 0
  %1306 = vmatpush1.bf16.msra.mxu0 %v1048
  %1307 = vmatprep.subr.bf16.mxu0 0
  %1308 = vmatpush1.bf16.msra.mxu0 %v1049
  %1309 = vmatprep.subr.bf16.mxu0 0
  %1310 = vmatpush1.bf16.msra.mxu0 %v1050
  %1311 = vmatprep.subr.bf16.mxu0 0
  %1312 = vmatpush1.bf16.msra.mxu0 %v1051
  %1313 = vmatprep.subr.bf16.mxu0 0
  %1314 = vmatpush1.bf16.msra.mxu0 %v1052
  %1315 = vmatprep.subr.bf16.mxu0 0
  %1316 = vmatpush1.bf16.msra.mxu0 %v1053
  %1317 = vmatprep.subr.bf16.mxu0 0
  %1318 = vmatpush1.bf16.msra.mxu0 %v1054
  %1319 = vmatprep.subr.bf16.mxu0 0
  %1320 = vmatpush1.bf16.msra.mxu0 %v1055
  %1321 = vmatprep.subr.bf16.mxu0 0
  %1322 = vmatpush1.bf16.msra.mxu0 %v1056
  %1323 = vmatprep.subr.bf16.mxu0 0
  %1324 = vmatpush1.bf16.msra.mxu0 %v1057
  %1325 = vmatprep.subr.bf16.mxu0 0
  %1326 = vmatpush1.bf16.msra.mxu0 %v1058
  %1327 = vmatprep.subr.bf16.mxu0 0
  %1328 = vmatpush1.bf16.msra.mxu0 %v1059
  %1329 = vmatprep.subr.bf16.mxu0 0
  %1330 = vmatpush1.bf16.msra.mxu0 %v1060
  %1331 = vmatprep.subr.bf16.mxu0 0
  %1332 = vmatpush1.bf16.msra.mxu0 %v1061
  %1333 = vmatprep.subr.bf16.mxu0 0
  %1334 = vmatpush1.bf16.msra.mxu0 %v1062
  %1335 = vmatprep.mubr.bf16.mxu0 %v356
  %1336 = vmatmul.mubr.bf16.gmra.mrb[0].mxu0 %v351
  %v1337 = vpop.f32.mrb[0].mxu0
  %v1338 = vadd.f32 %v1298, %v1337
  %v1339 = vpop.f32.mrb[0].mxu0
  %v1340 = vpop.f32.mrb[0].mxu0
  %v1341 = vpop.f32.mrb[0].mxu0
  %1342 = vdwg.mxu0
  %1343 = vmatprep.subr.bf16.mxu0 0
  %1344 = vmatpush1.bf16.msra.mxu0 %v1063
  %1345 = vmatprep.subr.bf16.mxu0 0
  %1346 = vmatpush1.bf16.msra.mxu0 %v1064
  %1347 = vmatprep.subr.bf16.mxu0 0
  %1348 = vmatpush1.bf16.msra.mxu0 %v1065
  %1349 = vmatprep.subr.bf16.mxu0 0
  %1350 = vmatpush1.bf16.msra.mxu0 %v1066
  %1351 = vmatprep.subr.bf16.mxu0 0
  %1352 = vmatpush1.bf16.msra.mxu0 %v1067
  %1353 = vmatprep.subr.bf16.mxu0 0
  %1354 = vmatpush1.bf16.msra.mxu0 %v1068
  %1355 = vmatprep.subr.bf16.mxu0 0
  %1356 = vmatpush1.bf16.msra.mxu0 %v1069
  %1357 = vmatprep.subr.bf16.mxu0 0
  %1358 = vmatpush1.bf16.msra.mxu0 %v1070
  %1359 = vmatprep.subr.bf16.mxu0 0
  %1360 = vmatpush1.bf16.msra.mxu0 %v1071
  %1361 = vmatprep.subr.bf16.mxu0 0
  %1362 = vmatpush1.bf16.msra.mxu0 %v1072
  %1363 = vmatprep.subr.bf16.mxu0 0
  %1364 = vmatpush1.bf16.msra.mxu0 %v1073
  %1365 = vmatprep.subr.bf16.mxu0 0
  %1366 = vmatpush1.bf16.msra.mxu0 %v1074
  %1367 = vmatprep.subr.bf16.mxu0 0
  %1368 = vmatpush1.bf16.msra.mxu0 %v1075
  %1369 = vmatprep.subr.bf16.mxu0 0
  %1370 = vmatpush1.bf16.msra.mxu0 %v1076
  %1371 = vmatprep.subr.bf16.mxu0 0
  %1372 = vmatpush1.bf16.msra.mxu0 %v1077
  %1373 = vmatprep.subr.bf16.mxu0 0
  %1374 = vmatpush1.bf16.msra.mxu0 %v1078
  %1375 = vmatprep.mubr.bf16.mxu0 %v365
  %1376 = vmatmul.mubr.bf16.gmra.mrb[0].mxu0 %v360
  %v1377 = vpop.f32.mrb[0].mxu0
  %v1378 = vadd.f32 %v1338, %v1377
  %v1379 = vpop.f32.mrb[0].mxu0
  %v1380 = vpop.f32.mrb[0].mxu0
  %v1381 = vpop.f32.mrb[0].mxu0
  %1382 = vdwg.mxu0
  %1383 = vmatprep.subr.bf16.mxu0 0
  %1384 = vmatpush1.bf16.msra.mxu0 %v1079
  %1385 = vmatprep.subr.bf16.mxu0 0
  %1386 = vmatpush1.bf16.msra.mxu0 %v1080
  %1387 = vmatprep.subr.bf16.mxu0 0
  %1388 = vmatpush1.bf16.msra.mxu0 %v1081
  %1389 = vmatprep.subr.bf16.mxu0 0
  %1390 = vmatpush1.bf16.msra.mxu0 %v1082
  %1391 = vmatprep.subr.bf16.mxu0 0
  %1392 = vmatpush1.bf16.msra.mxu0 %v1083
  %1393 = vmatprep.subr.bf16.mxu0 0
  %1394 = vmatpush1.bf16.msra.mxu0 %v1084
  %1395 = vmatprep.subr.bf16.mxu0 0
  %1396 = vmatpush1.bf16.msra.mxu0 %v1085
  %1397 = vmatprep.subr.bf16.mxu0 0
  %1398 = vmatpush1.bf16.msra.mxu0 %v1086
  %1399 = vmatprep.subr.bf16.mxu0 0
  %1400 = vmatpush1.bf16.msra.mxu0 %v1087
  %1401 = vmatprep.subr.bf16.mxu0 0
  %1402 = vmatpush1.bf16.msra.mxu0 %v1088
  %1403 = vmatprep.subr.bf16.mxu0 0
  %1404 = vmatpush1.bf16.msra.mxu0 %v1089
  %1405 = vmatprep.subr.bf16.mxu0 0
  %1406 = vmatpush1.bf16.msra.mxu0 %v1090
  %1407 = vmatprep.subr.bf16.mxu0 0
  %1408 = vmatpush1.bf16.msra.mxu0 %v1091
  %1409 = vmatprep.subr.bf16.mxu0 0
  %1410 = vmatpush1.bf16.msra.mxu0 %v1092
  %1411 = vmatprep.subr.bf16.mxu0 0
  %1412 = vmatpush1.bf16.msra.mxu0 %v1093
  %1413 = vmatprep.subr.bf16.mxu0 0
  %1414 = vmatpush1.bf16.msra.mxu0 %v1094
  %1415 = vmatprep.mubr.bf16.mxu0 %v375
  %1416 = vmatmul.mubr.bf16.gmra.mrb[0].mxu0 %v370
  %v1417 = vpop.f32.mrb[0].mxu0
  %v1418 = vadd.f32 %v1378, %v1417
  %v1419 = vpop.f32.mrb[0].mxu0
  %v1420 = vpop.f32.mrb[0].mxu0
  %v1421 = vpop.f32.mrb[0].mxu0
  %1422 = vdwg.mxu0
  %1423 = vmatprep.subr.bf16.mxu0 0
  %1424 = vmatpush1.bf16.msra.mxu0 %v1095
  %1425 = vmatprep.subr.bf16.mxu0 0
  %1426 = vmatpush1.bf16.msra.mxu0 %v1096
  %1427 = vmatprep.subr.bf16.mxu0 0
  %1428 = vmatpush1.bf16.msra.mxu0 %v1097
  %1429 = vmatprep.subr.bf16.mxu0 0
  %1430 = vmatpush1.bf16.msra.mxu0 %v1098
  %1431 = vmatprep.subr.bf16.mxu0 0
  %1432 = vmatpush1.bf16.msra.mxu0 %v1099
  %1433 = vmatprep.subr.bf16.mxu0 0
  %1434 = vmatpush1.bf16.msra.mxu0 %v1100
  %1435 = vmatprep.subr.bf16.mxu0 0
  %1436 = vmatpush1.bf16.msra.mxu0 %v1101
  %1437 = vmatprep.subr.bf16.mxu0 0
  %1438 = vmatpush1.bf16.msra.mxu0 %v1102
  %1439 = vmatprep.subr.bf16.mxu0 0
  %1440 = vmatpush1.bf16.msra.mxu0 %v1103
  %1441 = vmatprep.subr.bf16.mxu0 0
  %1442 = vmatpush1.bf16.msra.mxu0 %v1104
  %1443 = vmatprep.subr.bf16.mxu0 0
  %1444 = vmatpush1.bf16.msra.mxu0 %v1105
  %1445 = vmatprep.subr.bf16.mxu0 0
  %1446 = vmatpush1.bf16.msra.mxu0 %v1106
  %1447 = vmatprep.subr.bf16.mxu0 0
  %1448 = vmatpush1.bf16.msra.mxu0 %v1107
  %1449 = vmatprep.subr.bf16.mxu0 0
  %1450 = vmatpush1.bf16.msra.mxu0 %v1108
  %1451 = vmatprep.subr.bf16.mxu0 0
  %1452 = vmatpush1.bf16.msra.mxu0 %v1109
  %1453 = vmatprep.subr.bf16.mxu0 0
  %1454 = vmatpush1.bf16.msra.mxu0 %v1110
  %1455 = vmatprep.mubr.bf16.mxu0 %v385
  %1456 = vmatmul.mubr.bf16.gmra.mrb[0].mxu0 %v380
  %v1457 = vpop.f32.mrb[0].mxu0
  %v1458 = vadd.f32 %v1418, %v1457
  %v1459 = vpop.f32.mrb[0].mxu0
  %v1460 = vpop.f32.mrb[0].mxu0
  %v1461 = vpop.f32.mrb[0].mxu0
  %1462 = vdwg.mxu0
  %1463 = vmatprep.subr.bf16.mxu0 0
  %1464 = vmatpush1.bf16.msra.mxu0 %v1111
  %1465 = vmatprep.subr.bf16.mxu0 0
  %1466 = vmatpush1.bf16.msra.mxu0 %v1112
  %1467 = vmatprep.subr.bf16.mxu0 0
  %1468 = vmatpush1.bf16.msra.mxu0 %v1113
  %1469 = vmatprep.subr.bf16.mxu0 0
  %1470 = vmatpush1.bf16.msra.mxu0 %v1114
  %1471 = vmatprep.subr.bf16.mxu0 0
  %1472 = vmatpush1.bf16.msra.mxu0 %v1115
  %1473 = vmatprep.subr.bf16.mxu0 0
  %1474 = vmatpush1.bf16.msra.mxu0 %v1116
  %1475 = vmatprep.subr.bf16.mxu0 0
  %1476 = vmatpush1.bf16.msra.mxu0 %v1117
  %1477 = vmatprep.subr.bf16.mxu0 0
  %1478 = vmatpush1.bf16.msra.mxu0 %v1118
  %1479 = vmatprep.subr.bf16.mxu0 0
  %1480 = vmatpush1.bf16.msra.mxu0 0
  %1481 = vmatprep.subr.bf16.mxu0 0
  %1482 = vmatpush1.bf16.msra.mxu0 0
  %1483 = vmatprep.subr.bf16.mxu0 0
  %1484 = vmatpush1.bf16.msra.mxu0 0
  %1485 = vmatprep.subr.bf16.mxu0 0
  %1486 = vmatpush1.bf16.msra.mxu0 0
  %1487 = vmatprep.subr.bf16.mxu0 0
  %1488 = vmatpush1.bf16.msra.mxu0 0
  %1489 = vmatprep.subr.bf16.mxu0 0
  %1490 = vmatpush1.bf16.msra.mxu0 0
  %1491 = vmatprep.subr.bf16.mxu0 0
  %1492 = vmatpush1.bf16.msra.mxu0 0
  %1493 = vmatprep.subr.bf16.mxu0 0
  %1494 = vmatpush1.bf16.msra.mxu0 0
  %1495 = vmatprep.mubr.bf16.mxu0 0
  %1496 = vmatmul.mubr.bf16.gmra.mrb[0].mxu0 %v390
  %v1497 = vpop.f32.mrb[0].mxu0
  %v1498 = vadd.f32 %v1458, %v1497
  %v1499 = vpop.f32.mrb[0].mxu0
  %v1500 = vpop.f32.mrb[0].mxu0
  %v1501 = vpop.f32.mrb[0].mxu0
  %1502 = vdwg.mxu0
  %v1503 = vadd.f32 %v142, %v1498
  %1504 = vst [vmem:[%s7] sm:$0xff] %v1503
  // Predicated region
  $region30: #{lorentzian_kan_forward.1} parent=0 // pred_check
    _
  $region31: #{lorentzian_kan_forward.1} parent=0 // pred_check_branch
    %1506 = sbr.rel (0) target = $region33
  $region32: #{lorentzian_kan_forward.1} parent=0 // pred_region
    _
  $region33: #{lorentzian_kan_forward.1} parent=0 // pred_fallthru
    _
  // Predicated region
  $region34: #{lorentzian_kan_forward.1} parent=0 // pred_check
    _
  $region35: #{lorentzian_kan_forward.1} parent=0 // pred_check_branch
    %1508 = sbr.rel (0) target = $region37
  $region36: #{lorentzian_kan_forward.1} parent=0 // pred_region
    _
  $region37: #{lorentzian_kan_forward.1} parent=0 // pred_fallthru
    _

</llo_original>
